<compile_context>
chip_gen: v5e
topology: v5e:2x2
jax: 0.10.0
libtpu: 0.0.40
codegen_flags: <defaults>
</compile_context>

<pallas_src>
import functools

import numpy as np

import jax
import jax.numpy as jnp
from jax import lax
from jax.experimental import pallas as pl
from jax.experimental.pallas import tpu as pltpu


_PHASES = ((0, 0), (0, 1), (1, 0), (1, 1))


def _gelu_exact(x):
    # Exact (erf-based) GELU matching torch.nn.GELU(approximate='none').
    # erf via Abramowitz & Stegun 7.1.26 (max abs err ~1.5e-7); the divide goes to the
    # EUP via pl.reciprocal (free next to the exp).
    z = x * 0.7071067811865476
    a = jnp.abs(z)
    t = pl.reciprocal(1.0 + 0.3275911 * a)
    poly = t * (0.254829592 + t * (-0.284496736 + t * (1.421413741 +
                t * (-1.453152027 + t * 1.061405429))))
    erf_abs = 1.0 - poly * jnp.exp(-a * a)
    erf = jnp.where(z >= 0.0, erf_abs, -erf_abs)
    return 0.5 * x * (1.0 + erf)


def _upblock_kernel(xp_ref, wp_ref, g_ref, bmap_ref, w3_ref, b3_ref, nrm_ref,
                    mask_ref, o_ref, buf_ref, *, c_out, t0, t1, w0p, w1p,
                    inv_count, eps):
    """One grid step == one batch sample.  All data float32, (channels, flat-spatial)."""
    f32 = jnp.float32
    mask = mask_ref[...]                       # (C_pad, T1): 1 on real channel/col, 0 on halo/pad
    c_pad = mask.shape[0]
    base = 2 * w1p                             # 2 halo/margin rows above the valid region

    # ---- ConvTranspose2d(k=4, s=2, p=1): 2x2 subpixel phases -------------------------
    # Each output phase (ph, pw) is a 2x2 stride-1 conv over the (1,1)/(2,1)-padded input;
    # the 4 taps are im2col'd into one (C_pad, 4*C_in_pad) x (4*C_in_pad, T0) matmul and
    # the phase result is placed onto the interleaved, zero-haloed grid by a constant 0/1
    # scatter matmul (bias is pre-masked into bmap).
    y = bmap_ref[...]                          # (C_pad, T1)
    for idx, (ph, pw) in enumerate(_PHASES):
        taps = []
        for a in (0, 1):
            for b in (0, 1):
                off = (ph + a) * w0p + (pw + b)
                taps.append(xp_ref[0, :, off:off + t0])        # (C_in_pad, T0)
        patch = jnp.concatenate(taps, axis=0)                  # (4*C_in_pad, T0)
        yp = jnp.dot(wp_ref[idx], patch, preferred_element_type=f32)   # (C_pad, T0)
        y = y + jnp.dot(yp, g_ref[idx], preferred_element_type=f32)    # (C_pad, T1)

    # Zero only the top/bottom halo+margin rows of the flat scratch (the interior is
    # fully overwritten every stage).
    buf_ref[:, 0:base] = jnp.zeros((c_pad, base), f32)
    buf_ref[:, base + t1:base + t1 + base] = jnp.zeros((c_pad, base), f32)

    # ---- two [dense-3x3 (folded DSC) -> GroupNorm(1) -> GELU] stages -----------------
    h = y
    for s in range(2):
        buf_ref[:, base:base + t1] = h                         # valid rows of padded grid
        rows = []
        for dh in (-1, 0, 1):
            for dw in (-1, 0, 1):
                start = base + dh * w1p + dw
                rows.append(buf_ref[:, start:start + t1])      # shifted flat view
        p3 = jnp.concatenate(rows, axis=0)                     # (9*C_pad, T1) im2col patch
        z = jnp.dot(w3_ref[s], p3, preferred_element_type=f32) + b3_ref[s]   # (C_pad, T1)

        # GroupNorm(num_groups=1): stats over real channels x valid spatial positions.
        mean = jnp.sum(z * mask) * inv_count
        diff = z - mean
        var = jnp.sum(jnp.square(diff) * mask) * inv_count
        zn = diff * lax.rsqrt(var + eps)
        zn = zn * nrm_ref[s, 0] + nrm_ref[s, 1]
        h = _gelu_exact(zn) * mask                             # re-zero halo for next conv

    o_ref[0, :, :] = h[:c_out, :]                              # lane-dense store


def init_params(key, in_channels, out_channels):
    """Deterministic synthetic parameters, PyTorch layouts."""
    c_mid = in_channels // 2
    ks = jax.random.split(key, 14)

    def rnd(k, shape, scale=0.2):
        return scale * jax.random.normal(k, shape, jnp.float32)

    return {
        'up_w': rnd(ks[0], (in_channels, c_mid, 4, 4)),          # ConvTranspose2d
        'up_b': rnd(ks[1], (c_mid,)),
        'dsc1_dw_w': rnd(ks[2], (c_mid * 2, 1, 3, 3)),           # depthwise (groups=c_mid)
        'dsc1_dw_b': rnd(ks[3], (c_mid * 2,)),
        'dsc1_pw_w': rnd(ks[4], (out_channels, c_mid * 2, 1, 1)),
        'dsc1_pw_b': rnd(ks[5], (out_channels,)),
        'norm1_g': 1.0 + rnd(ks[6], (c_mid,), 0.1),
        'norm1_b': rnd(ks[7], (c_mid,), 0.1),
        'dsc2_dw_w': rnd(ks[8], (c_mid * 2, 1, 3, 3)),
        'dsc2_dw_b': rnd(ks[9], (c_mid * 2,)),
        'dsc2_pw_w': rnd(ks[10], (out_channels, c_mid * 2, 1, 1)),
        'dsc2_pw_b': rnd(ks[11], (out_channels,)),
        'norm2_g': 1.0 + rnd(ks[12], (c_mid,), 0.1),
        'norm2_b': rnd(ks[13], (c_mid,), 0.1),
    }


def upblock_pallas(x_nchw, p, in_channels, out_channels):
    N, C_in, H_in, W_in = x_nchw.shape
    assert C_in == in_channels
    c_mid = in_channels // 2
    # GroupNorm(1, in_channels//2) is applied to the DSC output (out_channels ch),
    # so the module only runs when out_channels == in_channels // 2.
    assert out_channels == c_mid, "UpBlock requires out_channels == in_channels // 2"
    H, W = 2 * H_in, 2 * W_in
    f32 = jnp.float32

    def rup(v, m):
        return (v + m - 1) // m * m

    c_in_pad = rup(C_in, 8)          # channels padded to full sublane groups
    c_pad = rup(c_mid, 8)
    w0p, h0p = W_in + 2, H_in + 3    # input padded 1 left/top, 1 right, 2 bottom
    l0 = h0p * w0p
    t0 = H_in * w0p                  # per-phase patch columns (contiguous flat range)
    w1p = W + 2                      # upsampled map: 1 halo column each side
    t1 = H * w1p                     # stored (valid-rows) flat length
    l1 = t1 + 4 * w1p                # scratch: + 2 halo/margin rows top & bottom

    # --- input: NCHW, zero-pad channels + spatial halo, flatten spatial ---------------
    x = x_nchw.astype(f32)
    xp = jnp.pad(x, ((0, 0), (0, c_in_pad - C_in), (1, 2), (1, 1)))
    xp = xp.reshape(N, c_in_pad, l0)

    # --- conv-transpose subpixel-phase weights: W_ph[co,(a,b,ci)] = Wt[ci,co,3-ph-2a,3-pw-2b]
    wt = jnp.transpose(p['up_w'], (2, 3, 1, 0))                  # (kh, kw, c_mid, C_in)

    def padw(m):                                                 # (c_mid, C_in) -> (c_pad, c_in_pad)
        return jnp.pad(m, ((0, c_pad - c_mid), (0, c_in_pad - C_in)))

    wp = jnp.stack([
        jnp.concatenate([padw(wt[3 - ph - 2 * a, 3 - pw - 2 * b])
                         for a in (0, 1) for b in (0, 1)], axis=1)
        for (ph, pw) in _PHASES])                                # (4, c_pad, 4*c_in_pad)

    # --- constant 0/1 scatter matrices: phase column t=(m,n) -> interleaved flat column
    g_np = np.zeros((4, t0, t1), np.float32)
    for idx, (ph, pw) in enumerate(_PHASES):
        for m in range(H_in):
            for n in range(W_in):
                g_np[idx, m * w0p + n, (2 * m + ph) * w1p + 1 + 2 * n + pw] = 1.0
    g = jnp.asarray(g_np)

    # --- validity mask (real channels x valid columns) and masked conv-transpose bias
    mask_np = np.zeros((c_pad, t1), np.float32)
    col = np.arange(t1) % w1p
    mask_np[:c_mid, :] = ((col >= 1) & (col <= W)).astype(np.float32)[None, :]
    mask = jnp.asarray(mask_np)

    def padc(v):                                                 # (c_mid,) -> (c_pad, 1)
        return jnp.pad(v, (0, c_pad - c_mid))[:, None]

    bmap = padc(p['up_b']) * mask                                # (c_pad, t1)

    # --- fold depthwise(3x3, mult 2) + pointwise(1x1) into one dense 3x3 (exact) ------
    def dsc_fold(dw_w, dw_b, pw_w, pw_b):
        dw = dw_w[:, 0].reshape(c_mid, 2, 3, 3)                  # [ci, m, kh, kw]
        pw = pw_w[:, :, 0, 0].reshape(out_channels, c_mid, 2)    # [co, ci, m]
        w_eff = jnp.einsum('oim,imhk->oihk', pw, dw,
                           precision=lax.Precision.HIGHEST)      # (co, ci, 3, 3)
        b_eff = jnp.einsum('oim,im->o', pw, dw_b.reshape(c_mid, 2),
                           precision=lax.Precision.HIGHEST) + pw_b
        blocks = [jnp.pad(w_eff[:, :, kh, kw],
                          ((0, c_pad - out_channels), (0, c_pad - c_mid)))
                  for kh in range(3) for kw in range(3)]
        return jnp.concatenate(blocks, axis=1), padc(b_eff)      # (c_pad, 9*c_pad), (c_pad, 1)

    w3a, b3a = dsc_fold(p['dsc1_dw_w'], p['dsc1_dw_b'], p['dsc1_pw_w'], p['dsc1_pw_b'])
    w3b, b3b = dsc_fold(p['dsc2_dw_w'], p['dsc2_dw_b'], p['dsc2_pw_w'], p['dsc2_pw_b'])
    w3 = jnp.stack([w3a, w3b])                                   # (2, c_pad, 9*c_pad)
    b3 = jnp.stack([b3a, b3b])                                   # (2, c_pad, 1)
    nrm = jnp.stack([jnp.stack([padc(p['norm1_g']), padc(p['norm1_b'])]),
                     jnp.stack([padc(p['norm2_g']), padc(p['norm2_b'])])])  # (2, 2, c_pad, 1)

    kernel = functools.partial(
        _upblock_kernel, c_out=out_channels, t0=t0, t1=t1, w0p=w0p, w1p=w1p,
        inv_count=1.0 / float(c_mid * H * W), eps=1e-5)

    def const_spec(arr):
        nd = arr.ndim
        return pl.BlockSpec(arr.shape, lambda n, _nd=nd: (0,) * _nd)

    # TODO(synk): for production-scale shapes (C_in >= 256, H_in >= 32) add a spatial
    # row-band grid axis with halo so the per-step footprint stays within v7x's 64 MiB.
    out = pl.pallas_call(
        kernel,
        out_shape=jax.ShapeDtypeStruct((N, out_channels, t1), f32),
        grid_spec=pltpu.PrefetchScalarGridSpec(
            num_scalar_prefetch=0,
            grid=(N,),
            in_specs=[
                pl.BlockSpec((1, c_in_pad, l0), lambda n: (n, 0, 0)),
                const_spec(wp), const_spec(g), const_spec(bmap),
                const_spec(w3), const_spec(b3), const_spec(nrm), const_spec(mask),
            ],
            out_specs=pl.BlockSpec((1, out_channels, t1), lambda n: (n, 0, 0)),
            scratch_shapes=[pltpu.VMEM((c_pad, l1), f32)],
        ),
        compiler_params=pltpu.CompilerParams(
            dimension_semantics=("parallel",),
            vmem_limit_bytes=32 * 1024 * 1024),
    )(xp, wp, g, bmap, w3, b3, nrm, mask)

    # Lane-dense kernel output is already channel-major; dropping the halo columns is a
    # cheap reshape + slice (no NHWC->NCHW transpose).
    out = out.reshape(N, out_channels, H, w1p)[:, :, :, 1:1 + W]
    return out


def upblock_reference(x_nchw, p, in_channels, out_channels):
    """Pure-JAX (XLA) reference mirroring the PyTorch forward, NCHW."""
    c_mid = in_channels // 2
    dn = ('NCHW', 'OIHW', 'NCHW')
    w_up = jnp.transpose(p['up_w'][:, :, ::-1, ::-1], (1, 0, 2, 3))
    y = lax.conv_general_dilated(x_nchw, w_up, window_strides=(1, 1),
                                 padding=[(2, 2), (2, 2)], lhs_dilation=(2, 2),
                                 dimension_numbers=dn)
    y = y + p['up_b'][None, :, None, None]

    def dsc(h, dw_w, dw_b, pw_w, pw_b):
        d = lax.conv_general_dilated(h, dw_w, window_strides=(1, 1),
                                     padding=[(1, 1), (1, 1)],
                                     dimension_numbers=dn,
                                     feature_group_count=c_mid)
        d = d + dw_b[None, :, None, None]
        z = lax.conv_general_dilated(d, pw_w, window_strides=(1, 1),
                                     padding=[(0, 0), (0, 0)],
                                     dimension_numbers=dn)
        return z + pw_b[None, :, None, None]

    def gn_gelu(h, g, b, eps=1e-5):
        mean = jnp.mean(h, axis=(1, 2, 3), keepdims=True)
        var = jnp.mean((h - mean) ** 2, axis=(1, 2, 3), keepdims=True)
        hn = (h - mean) / jnp.sqrt(var + eps)
        hn = hn * g[None, :, None, None] + b[None, :, None, None]
        return jax.nn.gelu(hn, approximate=False)

    h = dsc(y, p['dsc1_dw_w'], p['dsc1_dw_b'], p['dsc1_pw_w'], p['dsc1_pw_b'])
    h = gn_gelu(h, p['norm1_g'], p['norm1_b'])
    h = dsc(h, p['dsc2_dw_w'], p['dsc2_dw_b'], p['dsc2_pw_w'], p['dsc2_pw_b'])
    h = gn_gelu(h, p['norm2_g'], p['norm2_b'])
    return h


if __name__ == "__main__":
    in_channels, out_channels = 8, 4          # out_channels must equal in_channels // 2
    N, H_in, W_in = 2, 8, 8

    key = jax.random.PRNGKey(0)
    kx, kp = jax.random.split(key)
    x = jax.random.normal(kx, (N, in_channels, H_in, W_in), jnp.float32)
    params = init_params(kp, in_channels, out_channels)

    out = jax.block_until_ready(upblock_pallas(x, params, in_channels, out_channels))
    assert out.shape == (N, out_channels, 2 * H_in, 2 * W_in), out.shape

    ref = jax.block_until_ready(upblock_reference(x, params, in_channels, out_channels))
    max_err = float(jnp.max(jnp.abs(out - ref)))
    assert max_err < 2e-3, f"max abs err {max_err}"

    print("KERNEL_OK")
</pallas_src>

<mosaic_0001>
module attributes {stable_mosaic.version = 11 : i64} {
  func.func @_upblock_kernel(%arg0: i32, %arg1: memref<1x8x110xf32, #tpu.memory_space<vmem>>, %arg2: memref<4x8x32xf32, #tpu.memory_space<vmem>>, %arg3: memref<4x80x288xf32, #tpu.memory_space<vmem>>, %arg4: memref<8x288xf32, #tpu.memory_space<vmem>>, %arg5: memref<2x8x72xf32, #tpu.memory_space<vmem>>, %arg6: memref<2x8x1xf32, #tpu.memory_space<vmem>>, %arg7: memref<2x2x8x1xf32, #tpu.memory_space<vmem>>, %arg8: memref<8x288xf32, #tpu.memory_space<vmem>>, %arg9: memref<1x4x288xf32, #tpu.memory_space<vmem>>, %arg10: memref<8x360xf32, #tpu.memory_space<vmem>>) attributes {dimension_semantics = [#tpu.dimension_semantics<parallel>], iteration_bounds = array<i64: 2>, scalar_prefetch = 0 : i64, scratch_operands = 1 : i64, tpu.core_type = #tpu.core_type<tc>, window_params = [{transform_indices = @transform_0, window_bounds = array<i64: 1, 8, 110>}, {pipeline_mode = #tpu.pipeline_mode<synchronous>, transform_indices = @transform_1, window_bounds = array<i64: 4, 8, 32>}, {pipeline_mode = #tpu.pipeline_mode<synchronous>, transform_indices = @transform_2, window_bounds = array<i64: 4, 80, 288>}, {pipeline_mode = #tpu.pipeline_mode<synchronous>, transform_indices = @transform_3, window_bounds = array<i64: 8, 288>}, {pipeline_mode = #tpu.pipeline_mode<synchronous>, transform_indices = @transform_4, window_bounds = array<i64: 2, 8, 72>}, {pipeline_mode = #tpu.pipeline_mode<synchronous>, transform_indices = @transform_5, window_bounds = array<i64: 2, 8, 1>}, {pipeline_mode = #tpu.pipeline_mode<synchronous>, transform_indices = @transform_6, window_bounds = array<i64: 2, 2, 8, 1>}, {pipeline_mode = #tpu.pipeline_mode<synchronous>, transform_indices = @transform_7, window_bounds = array<i64: 8, 288>}, {transform_indices = @transform_8, window_bounds = array<i64: 1, 4, 288>}]} {
    %c0 = arith.constant 0 : index
    %c0_0 = arith.constant 0 : index
    %0 = vector.load %arg8[%c0, %c0_0] : memref<8x288xf32, #tpu.memory_space<vmem>>, vector<8x288xf32>
    %c0_1 = arith.constant 0 : index
    %c0_2 = arith.constant 0 : index
    %1 = vector.load %arg4[%c0_1, %c0_2] : memref<8x288xf32, #tpu.memory_space<vmem>>, vector<8x288xf32>
    %c0_3 = arith.constant 0 : index
    %c0_4 = arith.constant 0 : index
    %c0_5 = arith.constant 0 : index
    %2 = vector.load %arg1[%c0_3, %c0_4, %c0_5] : memref<1x8x110xf32, #tpu.memory_space<vmem>>, vector<1x8x80xf32>
    %3 = vector.shape_cast %2 : vector<1x8x80xf32> to vector<8x80xf32>
    %c0_6 = arith.constant 0 : index
    %c0_7 = arith.constant 0 : index
    %c1 = arith.constant 1 : index
    %4 = vector.load %arg1[%c0_6, %c0_7, %c1] : memref<1x8x110xf32, #tpu.memory_space<vmem>>, vector<1x8x80xf32>
    %5 = vector.shape_cast %4 : vector<1x8x80xf32> to vector<8x80xf32>
    %c0_8 = arith.constant 0 : index
    %c0_9 = arith.constant 0 : index
    %c10 = arith.constant 10 : index
    %6 = vector.load %arg1[%c0_8, %c0_9, %c10] : memref<1x8x110xf32, #tpu.memory_space<vmem>>, vector<1x8x80xf32>
    %7 = vector.shape_cast %6 : vector<1x8x80xf32> to vector<8x80xf32>
    %c0_10 = arith.constant 0 : index
    %c0_11 = arith.constant 0 : index
    %c11 = arith.constant 11 : index
    %8 = vector.load %arg1[%c0_10, %c0_11, %c11] : memref<1x8x110xf32, #tpu.memory_space<vmem>>, vector<1x8x80xf32>
    %9 = vector.shape_cast %8 : vector<1x8x80xf32> to vector<8x80xf32>
    %10 = tpu.concatenate %3, %5, %7, %9 in 0 : vector<8x80xf32>, vector<8x80xf32>, vector<8x80xf32>, vector<8x80xf32> -> vector<32x80xf32>
    %c0_12 = arith.constant 0 : index
    %c0_13 = arith.constant 0 : index
    %c0_14 = arith.constant 0 : index
    %11 = vector.load %arg2[%c0_12, %c0_13, %c0_14] : memref<4x8x32xf32, #tpu.memory_space<vmem>>, vector<1x8x32xf32>
    %12 = vector.shape_cast %11 : vector<1x8x32xf32> to vector<8x32xf32>
    %cst = arith.constant dense<0.000000e+00> : vector<8x80xf32>
    %13 = tpu.matmul %12, %10, %cst {dimension_numbers = #tpu.dot_dimension_numbers<[1], [0], [0], [1], [0, 0, 1, 1], [], []>} : vector<8x32xf32>, vector<32x80xf32>, vector<8x80xf32> -> vector<8x80xf32>
    %c0_15 = arith.constant 0 : index
    %c0_16 = arith.constant 0 : index
    %c0_17 = arith.constant 0 : index
    %14 = vector.load %arg3[%c0_15, %c0_16, %c0_17] : memref<4x80x288xf32, #tpu.memory_space<vmem>>, vector<1x80x288xf32>
    %15 = vector.shape_cast %14 : vector<1x80x288xf32> to vector<80x288xf32>
    %cst_18 = arith.constant dense<0.000000e+00> : vector<8x288xf32>
    %16 = tpu.matmul %13, %15, %cst_18 {dimension_numbers = #tpu.dot_dimension_numbers<[1], [0], [0], [1], [0, 0, 1, 1], [], []>} : vector<8x80xf32>, vector<80x288xf32>, vector<8x288xf32> -> vector<8x288xf32>
    %17 = arith.addf %1, %16 : vector<8x288xf32>
    %c0_19 = arith.constant 0 : index
    %c0_20 = arith.constant 0 : index
    %c1_21 = arith.constant 1 : index
    %18 = vector.load %arg1[%c0_19, %c0_20, %c1_21] : memref<1x8x110xf32, #tpu.memory_space<vmem>>, vector<1x8x80xf32>
    %19 = vector.shape_cast %18 : vector<1x8x80xf32> to vector<8x80xf32>
    %c0_22 = arith.constant 0 : index
    %c0_23 = arith.constant 0 : index
    %c2 = arith.constant 2 : index
    %20 = vector.load %arg1[%c0_22, %c0_23, %c2] : memref<1x8x110xf32, #tpu.memory_space<vmem>>, vector<1x8x80xf32>
    %21 = vector.shape_cast %20 : vector<1x8x80xf32> to vector<8x80xf32>
    %c0_24 = arith.constant 0 : index
    %c0_25 = arith.constant 0 : index
    %c11_26 = arith.constant 11 : index
    %22 = vector.load %arg1[%c0_24, %c0_25, %c11_26] : memref<1x8x110xf32, #tpu.memory_space<vmem>>, vector<1x8x80xf32>
    %23 = vector.shape_cast %22 : vector<1x8x80xf32> to vector<8x80xf32>
    %c0_27 = arith.constant 0 : index
    %c0_28 = arith.constant 0 : index
    %c12 = arith.constant 12 : index
    %24 = vector.load %arg1[%c0_27, %c0_28, %c12] : memref<1x8x110xf32, #tpu.memory_space<vmem>>, vector<1x8x80xf32>
    %25 = vector.shape_cast %24 : vector<1x8x80xf32> to vector<8x80xf32>
    %26 = tpu.concatenate %19, %21, %23, %25 in 0 : vector<8x80xf32>, vector<8x80xf32>, vector<8x80xf32>, vector<8x80xf32> -> vector<32x80xf32>
    %c1_29 = arith.constant 1 : index
    %c0_30 = arith.constant 0 : index
    %c0_31 = arith.constant 0 : index
    %27 = vector.load %arg2[%c1_29, %c0_30, %c0_31] : memref<4x8x32xf32, #tpu.memory_space<vmem>>, vector<1x8x32xf32>
    %28 = vector.shape_cast %27 : vector<1x8x32xf32> to vector<8x32xf32>
    %cst_32 = arith.constant dense<0.000000e+00> : vector<8x80xf32>
    %29 = tpu.matmul %28, %26, %cst_32 {dimension_numbers = #tpu.dot_dimension_numbers<[1], [0], [0], [1], [0, 0, 1, 1], [], []>} : vector<8x32xf32>, vector<32x80xf32>, vector<8x80xf32> -> vector<8x80xf32>
    %c1_33 = arith.constant 1 : index
    %c0_34 = arith.constant 0 : index
    %c0_35 = arith.constant 0 : index
    %30 = vector.load %arg3[%c1_33, %c0_34, %c0_35] : memref<4x80x288xf32, #tpu.memory_space<vmem>>, vector<1x80x288xf32>
    %31 = vector.shape_cast %30 : vector<1x80x288xf32> to vector<80x288xf32>
    %cst_36 = arith.constant dense<0.000000e+00> : vector<8x288xf32>
    %32 = tpu.matmul %29, %31, %cst_36 {dimension_numbers = #tpu.dot_dimension_numbers<[1], [0], [0], [1], [0, 0, 1, 1], [], []>} : vector<8x80xf32>, vector<80x288xf32>, vector<8x288xf32> -> vector<8x288xf32>
    %33 = arith.addf %17, %32 : vector<8x288xf32>
    %c0_37 = arith.constant 0 : index
    %c0_38 = arith.constant 0 : index
    %c10_39 = arith.constant 10 : index
    %34 = vector.load %arg1[%c0_37, %c0_38, %c10_39] : memref<1x8x110xf32, #tpu.memory_space<vmem>>, vector<1x8x80xf32>
    %35 = vector.shape_cast %34 : vector<1x8x80xf32> to vector<8x80xf32>
    %c0_40 = arith.constant 0 : index
    %c0_41 = arith.constant 0 : index
    %c11_42 = arith.constant 11 : index
    %36 = vector.load %arg1[%c0_40, %c0_41, %c11_42] : memref<1x8x110xf32, #tpu.memory_space<vmem>>, vector<1x8x80xf32>
    %37 = vector.shape_cast %36 : vector<1x8x80xf32> to vector<8x80xf32>
    %c0_43 = arith.constant 0 : index
    %c0_44 = arith.constant 0 : index
    %c20 = arith.constant 20 : index
    %38 = vector.load %arg1[%c0_43, %c0_44, %c20] : memref<1x8x110xf32, #tpu.memory_space<vmem>>, vector<1x8x80xf32>
    %39 = vector.shape_cast %38 : vector<1x8x80xf32> to vector<8x80xf32>
    %c0_45 = arith.constant 0 : index
    %c0_46 = arith.constant 0 : index
    %c21 = arith.constant 21 : index
    %40 = vector.load %arg1[%c0_45, %c0_46, %c21] : memref<1x8x110xf32, #tpu.memory_space<vmem>>, vector<1x8x80xf32>
    %41 = vector.shape_cast %40 : vector<1x8x80xf32> to vector<8x80xf32>
    %42 = tpu.concatenate %35, %37, %39, %41 in 0 : vector<8x80xf32>, vector<8x80xf32>, vector<8x80xf32>, vector<8x80xf32> -> vector<32x80xf32>
    %c2_47 = arith.constant 2 : index
    %c0_48 = arith.constant 0 : index
    %c0_49 = arith.constant 0 : index
    %43 = vector.load %arg2[%c2_47, %c0_48, %c0_49] : memref<4x8x32xf32, #tpu.memory_space<vmem>>, vector<1x8x32xf32>
    %44 = vector.shape_cast %43 : vector<1x8x32xf32> to vector<8x32xf32>
    %cst_50 = arith.constant dense<0.000000e+00> : vector<8x80xf32>
    %45 = tpu.matmul %44, %42, %cst_50 {dimension_numbers = #tpu.dot_dimension_numbers<[1], [0], [0], [1], [0, 0, 1, 1], [], []>} : vector<8x32xf32>, vector<32x80xf32>, vector<8x80xf32> -> vector<8x80xf32>
    %c2_51 = arith.constant 2 : index
    %c0_52 = arith.constant 0 : index
    %c0_53 = arith.constant 0 : index
    %46 = vector.load %arg3[%c2_51, %c0_52, %c0_53] : memref<4x80x288xf32, #tpu.memory_space<vmem>>, vector<1x80x288xf32>
    %47 = vector.shape_cast %46 : vector<1x80x288xf32> to vector<80x288xf32>
    %cst_54 = arith.constant dense<0.000000e+00> : vector<8x288xf32>
    %48 = tpu.matmul %45, %47, %cst_54 {dimension_numbers = #tpu.dot_dimension_numbers<[1], [0], [0], [1], [0, 0, 1, 1], [], []>} : vector<8x80xf32>, vector<80x288xf32>, vector<8x288xf32> -> vector<8x288xf32>
    %49 = arith.addf %33, %48 : vector<8x288xf32>
    %c0_55 = arith.constant 0 : index
    %c0_56 = arith.constant 0 : index
    %c11_57 = arith.constant 11 : index
    %50 = vector.load %arg1[%c0_55, %c0_56, %c11_57] : memref<1x8x110xf32, #tpu.memory_space<vmem>>, vector<1x8x80xf32>
    %51 = vector.shape_cast %50 : vector<1x8x80xf32> to vector<8x80xf32>
    %c0_58 = arith.constant 0 : index
    %c0_59 = arith.constant 0 : index
    %c12_60 = arith.constant 12 : index
    %52 = vector.load %arg1[%c0_58, %c0_59, %c12_60] : memref<1x8x110xf32, #tpu.memory_space<vmem>>, vector<1x8x80xf32>
    %53 = vector.shape_cast %52 : vector<1x8x80xf32> to vector<8x80xf32>
    %c0_61 = arith.constant 0 : index
    %c0_62 = arith.constant 0 : index
    %c21_63 = arith.constant 21 : index
    %54 = vector.load %arg1[%c0_61, %c0_62, %c21_63] : memref<1x8x110xf32, #tpu.memory_space<vmem>>, vector<1x8x80xf32>
    %55 = vector.shape_cast %54 : vector<1x8x80xf32> to vector<8x80xf32>
    %c0_64 = arith.constant 0 : index
    %c0_65 = arith.constant 0 : index
    %c22 = arith.constant 22 : index
    %56 = vector.load %arg1[%c0_64, %c0_65, %c22] : memref<1x8x110xf32, #tpu.memory_space<vmem>>, vector<1x8x80xf32>
    %57 = vector.shape_cast %56 : vector<1x8x80xf32> to vector<8x80xf32>
    %58 = tpu.concatenate %51, %53, %55, %57 in 0 : vector<8x80xf32>, vector<8x80xf32>, vector<8x80xf32>, vector<8x80xf32> -> vector<32x80xf32>
    %c3 = arith.constant 3 : index
    %c0_66 = arith.constant 0 : index
    %c0_67 = arith.constant 0 : index
    %59 = vector.load %arg2[%c3, %c0_66, %c0_67] : memref<4x8x32xf32, #tpu.memory_space<vmem>>, vector<1x8x32xf32>
    %60 = vector.shape_cast %59 : vector<1x8x32xf32> to vector<8x32xf32>
    %cst_68 = arith.constant dense<0.000000e+00> : vector<8x80xf32>
    %61 = tpu.matmul %60, %58, %cst_68 {dimension_numbers = #tpu.dot_dimension_numbers<[1], [0], [0], [1], [0, 0, 1, 1], [], []>} : vector<8x32xf32>, vector<32x80xf32>, vector<8x80xf32> -> vector<8x80xf32>
    %c3_69 = arith.constant 3 : index
    %c0_70 = arith.constant 0 : index
    %c0_71 = arith.constant 0 : index
    %62 = vector.load %arg3[%c3_69, %c0_70, %c0_71] : memref<4x80x288xf32, #tpu.memory_space<vmem>>, vector<1x80x288xf32>
    %63 = vector.shape_cast %62 : vector<1x80x288xf32> to vector<80x288xf32>
    %cst_72 = arith.constant dense<0.000000e+00> : vector<8x288xf32>
    %64 = tpu.matmul %61, %63, %cst_72 {dimension_numbers = #tpu.dot_dimension_numbers<[1], [0], [0], [1], [0, 0, 1, 1], [], []>} : vector<8x80xf32>, vector<80x288xf32>, vector<8x288xf32> -> vector<8x288xf32>
    %65 = arith.addf %49, %64 : vector<8x288xf32>
    %cst_73 = arith.constant 0.000000e+00 : f32
    %66 = vector.broadcast %cst_73 : f32 to vector<8x36xf32>
    %c0_74 = arith.constant 0 : index
    %c0_75 = arith.constant 0 : index
    %67 = vector.load %arg10[%c0_74, %c0_75] : memref<8x360xf32, #tpu.memory_space<vmem>>, vector<8x36xf32>
    tpu.vector_store %arg10[%c0_74, %c0_75], %66 {strides = array<i32>} : memref<8x360xf32, #tpu.memory_space<vmem>>, vector<8x36xf32>,
    %cst_76 = arith.constant 0.000000e+00 : f32
    %68 = vector.broadcast %cst_76 : f32 to vector<8x36xf32>
    %c0_77 = arith.constant 0 : index
    %c324 = arith.constant 324 : index
    %69 = vector.load %arg10[%c0_77, %c324] : memref<8x360xf32, #tpu.memory_space<vmem>>, vector<8x36xf32>
    tpu.vector_store %arg10[%c0_77, %c324], %68 {strides = array<i32>} : memref<8x360xf32, #tpu.memory_space<vmem>>, vector<8x36xf32>,
    %c0_78 = arith.constant 0 : index
    %c36 = arith.constant 36 : index
    %70 = vector.load %arg10[%c0_78, %c36] : memref<8x360xf32, #tpu.memory_space<vmem>>, vector<8x288xf32>
    tpu.vector_store %arg10[%c0_78, %c36], %65 {strides = array<i32>} : memref<8x360xf32, #tpu.memory_space<vmem>>, vector<8x288xf32>,
    %c0_79 = arith.constant 0 : index
    %c17 = arith.constant 17 : index
    %71 = vector.load %arg10[%c0_79, %c17] : memref<8x360xf32, #tpu.memory_space<vmem>>, vector<8x288xf32>
    %c0_80 = arith.constant 0 : index
    %c18 = arith.constant 18 : index
    %72 = vector.load %arg10[%c0_80, %c18] : memref<8x360xf32, #tpu.memory_space<vmem>>, vector<8x288xf32>
    %c0_81 = arith.constant 0 : index
    %c19 = arith.constant 19 : index
    %73 = vector.load %arg10[%c0_81, %c19] : memref<8x360xf32, #tpu.memory_space<vmem>>, vector<8x288xf32>
    %c0_82 = arith.constant 0 : index
    %c35 = arith.constant 35 : index
    %74 = vector.load %arg10[%c0_82, %c35] : memref<8x360xf32, #tpu.memory_space<vmem>>, vector<8x288xf32>
    %c0_83 = arith.constant 0 : index
    %c36_84 = arith.constant 36 : index
    %75 = vector.load %arg10[%c0_83, %c36_84] : memref<8x360xf32, #tpu.memory_space<vmem>>, vector<8x288xf32>
    %c0_85 = arith.constant 0 : index
    %c37 = arith.constant 37 : index
    %76 = vector.load %arg10[%c0_85, %c37] : memref<8x360xf32, #tpu.memory_space<vmem>>, vector<8x288xf32>
    %c0_86 = arith.constant 0 : index
    %c53 = arith.constant 53 : index
    %77 = vector.load %arg10[%c0_86, %c53] : memref<8x360xf32, #tpu.memory_space<vmem>>, vector<8x288xf32>
    %c0_87 = arith.constant 0 : index
    %c54 = arith.constant 54 : index
    %78 = vector.load %arg10[%c0_87, %c54] : memref<8x360xf32, #tpu.memory_space<vmem>>, vector<8x288xf32>
    %c0_88 = arith.constant 0 : index
    %c55 = arith.constant 55 : index
    %79 = vector.load %arg10[%c0_88, %c55] : memref<8x360xf32, #tpu.memory_space<vmem>>, vector<8x288xf32>
    %80 = tpu.concatenate %71, %72, %73, %74, %75, %76, %77, %78, %79 in 0 : vector<8x288xf32>, vector<8x288xf32>, vector<8x288xf32>, vector<8x288xf32>, vector<8x288xf32>, vector<8x288xf32>, vector<8x288xf32>, vector<8x288xf32>, vector<8x288xf32> -> vector<72x288xf32>
    %c0_89 = arith.constant 0 : index
    %c0_90 = arith.constant 0 : index
    %c0_91 = arith.constant 0 : index
    %81 = vector.load %arg5[%c0_89, %c0_90, %c0_91] : memref<2x8x72xf32, #tpu.memory_space<vmem>>, vector<1x8x72xf32>
    %82 = vector.shape_cast %81 : vector<1x8x72xf32> to vector<8x72xf32>
    %cst_92 = arith.constant dense<0.000000e+00> : vector<8x288xf32>
    %83 = tpu.matmul %82, %80, %cst_92 {dimension_numbers = #tpu.dot_dimension_numbers<[1], [0], [0], [1], [0, 0, 1, 1], [], []>} : vector<8x72xf32>, vector<72x288xf32>, vector<8x288xf32> -> vector<8x288xf32>
    %c0_93 = arith.constant 0 : index
    %c0_94 = arith.constant 0 : index
    %c0_95 = arith.constant 0 : index
    %84 = vector.load %arg6[%c0_93, %c0_94, %c0_95] : memref<2x8x1xf32, #tpu.memory_space<vmem>>, vector<1x8x1xf32>
    %85 = vector.shape_cast %84 : vector<1x8x1xf32> to vector<8x1xf32>
    %86 = vector.broadcast %85 : vector<8x1xf32> to vector<8x288xf32>
    %87 = arith.addf %83, %86 : vector<8x288xf32>
    %88 = arith.mulf %87, %0 : vector<8x288xf32>
    %89 = vector.shape_cast %88 : vector<8x288xf32> to vector<1x8x288xf32>
    %cst_96 = arith.constant dense<0.000000e+00> : vector<1xf32>
    %90 = vector.multi_reduction <add>, %89, %cst_96 [1, 2] : vector<1x8x288xf32> to vector<1xf32>
    %91 = vector.shape_cast %90 : vector<1xf32> to vector<1x1x1xf32>
    %92 = vector.extract %91[0, 0, 0] : f32 from vector<1x1x1xf32>
    %cst_97 = arith.constant 9.765625E-4 : f32
    %93 = arith.mulf %92, %cst_97 : f32
    %94 = vector.broadcast %93 : f32 to vector<8x288xf32>
    %95 = arith.subf %87, %94 : vector<8x288xf32>
    %96 = arith.mulf %95, %95 : vector<8x288xf32>
    %97 = arith.mulf %96, %0 : vector<8x288xf32>
    %98 = vector.shape_cast %97 : vector<8x288xf32> to vector<1x8x288xf32>
    %cst_98 = arith.constant dense<0.000000e+00> : vector<1xf32>
    %99 = vector.multi_reduction <add>, %98, %cst_98 [1, 2] : vector<1x8x288xf32> to vector<1xf32>
    %100 = vector.shape_cast %99 : vector<1xf32> to vector<1x1x1xf32>
    %101 = vector.extract %100[0, 0, 0] : f32 from vector<1x1x1xf32>
    %cst_99 = arith.constant 9.765625E-4 : f32
    %102 = arith.mulf %101, %cst_99 : f32
    %cst_100 = arith.constant 9.99999974E-6 : f32
    %103 = arith.addf %102, %cst_100 : f32
    %104 = math.rsqrt %103 : f32
    %105 = vector.broadcast %104 : f32 to vector<8x288xf32>
    %106 = arith.mulf %95, %105 : vector<8x288xf32>
    %c0_101 = arith.constant 0 : index
    %c0_102 = arith.constant 0 : index
    %c0_103 = arith.constant 0 : index
    %c0_104 = arith.constant 0 : index
    %107 = vector.load %arg7[%c0_101, %c0_102, %c0_103, %c0_104] : memref<2x2x8x1xf32, #tpu.memory_space<vmem>>, vector<1x1x8x1xf32>
    %108 = vector.shape_cast %107 : vector<1x1x8x1xf32> to vector<8x1xf32>
    %109 = vector.broadcast %108 : vector<8x1xf32> to vector<8x288xf32>
    %110 = arith.mulf %106, %109 : vector<8x288xf32>
    %c0_105 = arith.constant 0 : index
    %c1_106 = arith.constant 1 : index
    %c0_107 = arith.constant 0 : index
    %c0_108 = arith.constant 0 : index
    %111 = vector.load %arg7[%c0_105, %c1_106, %c0_107, %c0_108] : memref<2x2x8x1xf32, #tpu.memory_space<vmem>>, vector<1x1x8x1xf32>
    %112 = vector.shape_cast %111 : vector<1x1x8x1xf32> to vector<8x1xf32>
    %113 = vector.broadcast %112 : vector<8x1xf32> to vector<8x288xf32>
    %114 = arith.addf %110, %113 : vector<8x288xf32>
    %cst_109 = arith.constant 0.707106769 : f32
    %115 = vector.broadcast %cst_109 : f32 to vector<8x288xf32>
    %116 = arith.mulf %114, %115 : vector<8x288xf32>
    %117 = math.absf %116 : vector<8x288xf32>
    %cst_110 = arith.constant 0.327591091 : f32
    %118 = vector.broadcast %cst_110 : f32 to vector<8x288xf32>
    %119 = arith.mulf %118, %117 : vector<8x288xf32>
    %cst_111 = arith.constant 1.000000e+00 : f32
    %120 = vector.broadcast %cst_111 : f32 to vector<8x288xf32>
    %121 = arith.addf %120, %119 : vector<8x288xf32>
    %122 = tpu.reciprocal %121 : vector<8x288xf32> -> vector<8x288xf32>
    %cst_112 = arith.constant 1.06140542 : f32
    %123 = vector.broadcast %cst_112 : f32 to vector<8x288xf32>
    %124 = arith.mulf %122, %123 : vector<8x288xf32>
    %cst_113 = arith.constant -1.45315206 : f32
    %125 = vector.broadcast %cst_113 : f32 to vector<8x288xf32>
    %126 = arith.addf %125, %124 : vector<8x288xf32>
    %127 = arith.mulf %122, %126 : vector<8x288xf32>
    %cst_114 = arith.constant 1.42141378 : f32
    %128 = vector.broadcast %cst_114 : f32 to vector<8x288xf32>
    %129 = arith.addf %128, %127 : vector<8x288xf32>
    %130 = arith.mulf %122, %129 : vector<8x288xf32>
    %cst_115 = arith.constant -0.284496725 : f32
    %131 = vector.broadcast %cst_115 : f32 to vector<8x288xf32>
    %132 = arith.addf %131, %130 : vector<8x288xf32>
    %133 = arith.mulf %122, %132 : vector<8x288xf32>
    %cst_116 = arith.constant 0.254829586 : f32
    %134 = vector.broadcast %cst_116 : f32 to vector<8x288xf32>
    %135 = arith.addf %134, %133 : vector<8x288xf32>
    %136 = arith.mulf %122, %135 : vector<8x288xf32>
    %cst_117 = arith.constant 0.000000e+00 : f32
    %137 = vector.broadcast %cst_117 : f32 to vector<8x288xf32>
    %138 = arith.subf %137, %117 : vector<8x288xf32>
    %139 = arith.mulf %138, %117 : vector<8x288xf32>
    %140 = math.exp %139 : vector<8x288xf32>
    %141 = arith.mulf %136, %140 : vector<8x288xf32>
    %cst_118 = arith.constant 1.000000e+00 : f32
    %142 = vector.broadcast %cst_118 : f32 to vector<8x288xf32>
    %143 = arith.subf %142, %141 : vector<8x288xf32>
    %cst_119 = arith.constant 0.000000e+00 : f32
    %144 = vector.broadcast %cst_119 : f32 to vector<8x288xf32>
    %145 = arith.cmpf oge, %116, %144 : vector<8x288xf32>
    %cst_120 = arith.constant 0.000000e+00 : f32
    %146 = vector.broadcast %cst_120 : f32 to vector<8x288xf32>
    %147 = arith.subf %146, %143 : vector<8x288xf32>
    %148 = arith.select %145, %143, %147 : vector<8x288xi1>, vector<8x288xf32>
    %cst_121 = arith.constant 5.000000e-01 : f32
    %149 = vector.broadcast %cst_121 : f32 to vector<8x288xf32>
    %150 = arith.mulf %149, %114 : vector<8x288xf32>
    %cst_122 = arith.constant 1.000000e+00 : f32
    %151 = vector.broadcast %cst_122 : f32 to vector<8x288xf32>
    %152 = arith.addf %151, %148 : vector<8x288xf32>
    %153 = arith.mulf %150, %152 : vector<8x288xf32>
    %154 = arith.mulf %153, %0 : vector<8x288xf32>
    %c0_123 = arith.constant 0 : index
    %c36_124 = arith.constant 36 : index
    %155 = vector.load %arg10[%c0_123, %c36_124] : memref<8x360xf32, #tpu.memory_space<vmem>>, vector<8x288xf32>
    tpu.vector_store %arg10[%c0_123, %c36_124], %154 {strides = array<i32>} : memref<8x360xf32, #tpu.memory_space<vmem>>, vector<8x288xf32>,
    %c0_125 = arith.constant 0 : index
    %c17_126 = arith.constant 17 : index
    %156 = vector.load %arg10[%c0_125, %c17_126] : memref<8x360xf32, #tpu.memory_space<vmem>>, vector<8x288xf32>
    %c0_127 = arith.constant 0 : index
    %c18_128 = arith.constant 18 : index
    %157 = vector.load %arg10[%c0_127, %c18_128] : memref<8x360xf32, #tpu.memory_space<vmem>>, vector<8x288xf32>
    %c0_129 = arith.constant 0 : index
    %c19_130 = arith.constant 19 : index
    %158 = vector.load %arg10[%c0_129, %c19_130] : memref<8x360xf32, #tpu.memory_space<vmem>>, vector<8x288xf32>
    %c0_131 = arith.constant 0 : index
    %c35_132 = arith.constant 35 : index
    %159 = vector.load %arg10[%c0_131, %c35_132] : memref<8x360xf32, #tpu.memory_space<vmem>>, vector<8x288xf32>
    %c0_133 = arith.constant 0 : index
    %c36_134 = arith.constant 36 : index
    %160 = vector.load %arg10[%c0_133, %c36_134] : memref<8x360xf32, #tpu.memory_space<vmem>>, vector<8x288xf32>
    %c0_135 = arith.constant 0 : index
    %c37_136 = arith.constant 37 : index
    %161 = vector.load %arg10[%c0_135, %c37_136] : memref<8x360xf32, #tpu.memory_space<vmem>>, vector<8x288xf32>
    %c0_137 = arith.constant 0 : index
    %c53_138 = arith.constant 53 : index
    %162 = vector.load %arg10[%c0_137, %c53_138] : memref<8x360xf32, #tpu.memory_space<vmem>>, vector<8x288xf32>
    %c0_139 = arith.constant 0 : index
    %c54_140 = arith.constant 54 : index
    %163 = vector.load %arg10[%c0_139, %c54_140] : memref<8x360xf32, #tpu.memory_space<vmem>>, vector<8x288xf32>
    %c0_141 = arith.constant 0 : index
    %c55_142 = arith.constant 55 : index
    %164 = vector.load %arg10[%c0_141, %c55_142] : memref<8x360xf32, #tpu.memory_space<vmem>>, vector<8x288xf32>
    %165 = tpu.concatenate %156, %157, %158, %159, %160, %161, %162, %163, %164 in 0 : vector<8x288xf32>, vector<8x288xf32>, vector<8x288xf32>, vector<8x288xf32>, vector<8x288xf32>, vector<8x288xf32>, vector<8x288xf32>, vector<8x288xf32>, vector<8x288xf32> -> vector<72x288xf32>
    %c1_143 = arith.constant 1 : index
    %c0_144 = arith.constant 0 : index
    %c0_145 = arith.constant 0 : index
    %166 = vector.load %arg5[%c1_143, %c0_144, %c0_145] : memref<2x8x72xf32, #tpu.memory_space<vmem>>, vector<1x8x72xf32>
    %167 = vector.shape_cast %166 : vector<1x8x72xf32> to vector<8x72xf32>
    %cst_146 = arith.constant dense<0.000000e+00> : vector<8x288xf32>
    %168 = tpu.matmul %167, %165, %cst_146 {dimension_numbers = #tpu.dot_dimension_numbers<[1], [0], [0], [1], [0, 0, 1, 1], [], []>} : vector<8x72xf32>, vector<72x288xf32>, vector<8x288xf32> -> vector<8x288xf32>
    %c1_147 = arith.constant 1 : index
    %c0_148 = arith.constant 0 : index
    %c0_149 = arith.constant 0 : index
    %169 = vector.load %arg6[%c1_147, %c0_148, %c0_149] : memref<2x8x1xf32, #tpu.memory_space<vmem>>, vector<1x8x1xf32>
    %170 = vector.shape_cast %169 : vector<1x8x1xf32> to vector<8x1xf32>
    %171 = vector.broadcast %170 : vector<8x1xf32> to vector<8x288xf32>
    %172 = arith.addf %168, %171 : vector<8x288xf32>
    %173 = arith.mulf %172, %0 : vector<8x288xf32>
    %174 = vector.shape_cast %173 : vector<8x288xf32> to vector<1x8x288xf32>
    %cst_150 = arith.constant dense<0.000000e+00> : vector<1xf32>
    %175 = vector.multi_reduction <add>, %174, %cst_150 [1, 2] : vector<1x8x288xf32> to vector<1xf32>
    %176 = vector.shape_cast %175 : vector<1xf32> to vector<1x1x1xf32>
    %177 = vector.extract %176[0, 0, 0] : f32 from vector<1x1x1xf32>
    %cst_151 = arith.constant 9.765625E-4 : f32
    %178 = arith.mulf %177, %cst_151 : f32
    %179 = vector.broadcast %178 : f32 to vector<8x288xf32>
    %180 = arith.subf %172, %179 : vector<8x288xf32>
    %181 = arith.mulf %180, %180 : vector<8x288xf32>
    %182 = arith.mulf %181, %0 : vector<8x288xf32>
    %183 = vector.shape_cast %182 : vector<8x288xf32> to vector<1x8x288xf32>
    %cst_152 = arith.constant dense<0.000000e+00> : vector<1xf32>
    %184 = vector.multi_reduction <add>, %183, %cst_152 [1, 2] : vector<1x8x288xf32> to vector<1xf32>
    %185 = vector.shape_cast %184 : vector<1xf32> to vector<1x1x1xf32>
    %186 = vector.extract %185[0, 0, 0] : f32 from vector<1x1x1xf32>
    %cst_153 = arith.constant 9.765625E-4 : f32
    %187 = arith.mulf %186, %cst_153 : f32
    %cst_154 = arith.constant 9.99999974E-6 : f32
    %188 = arith.addf %187, %cst_154 : f32
    %189 = math.rsqrt %188 : f32
    %190 = vector.broadcast %189 : f32 to vector<8x288xf32>
    %191 = arith.mulf %180, %190 : vector<8x288xf32>
    %c1_155 = arith.constant 1 : index
    %c0_156 = arith.constant 0 : index
    %c0_157 = arith.constant 0 : index
    %c0_158 = arith.constant 0 : index
    %192 = vector.load %arg7[%c1_155, %c0_156, %c0_157, %c0_158] : memref<2x2x8x1xf32, #tpu.memory_space<vmem>>, vector<1x1x8x1xf32>
    %193 = vector.shape_cast %192 : vector<1x1x8x1xf32> to vector<8x1xf32>
    %194 = vector.broadcast %193 : vector<8x1xf32> to vector<8x288xf32>
    %195 = arith.mulf %191, %194 : vector<8x288xf32>
    %c1_159 = arith.constant 1 : index
    %c1_160 = arith.constant 1 : index
    %c0_161 = arith.constant 0 : index
    %c0_162 = arith.constant 0 : index
    %196 = vector.load %arg7[%c1_159, %c1_160, %c0_161, %c0_162] : memref<2x2x8x1xf32, #tpu.memory_space<vmem>>, vector<1x1x8x1xf32>
    %197 = vector.shape_cast %196 : vector<1x1x8x1xf32> to vector<8x1xf32>
    %198 = vector.broadcast %197 : vector<8x1xf32> to vector<8x288xf32>
    %199 = arith.addf %195, %198 : vector<8x288xf32>
    %cst_163 = arith.constant 0.707106769 : f32
    %200 = vector.broadcast %cst_163 : f32 to vector<8x288xf32>
    %201 = arith.mulf %199, %200 : vector<8x288xf32>
    %202 = math.absf %201 : vector<8x288xf32>
    %cst_164 = arith.constant 0.327591091 : f32
    %203 = vector.broadcast %cst_164 : f32 to vector<8x288xf32>
    %204 = arith.mulf %203, %202 : vector<8x288xf32>
    %cst_165 = arith.constant 1.000000e+00 : f32
    %205 = vector.broadcast %cst_165 : f32 to vector<8x288xf32>
    %206 = arith.addf %205, %204 : vector<8x288xf32>
    %207 = tpu.reciprocal %206 : vector<8x288xf32> -> vector<8x288xf32>
    %cst_166 = arith.constant 1.06140542 : f32
    %208 = vector.broadcast %cst_166 : f32 to vector<8x288xf32>
    %209 = arith.mulf %207, %208 : vector<8x288xf32>
    %cst_167 = arith.constant -1.45315206 : f32
    %210 = vector.broadcast %cst_167 : f32 to vector<8x288xf32>
    %211 = arith.addf %210, %209 : vector<8x288xf32>
    %212 = arith.mulf %207, %211 : vector<8x288xf32>
    %cst_168 = arith.constant 1.42141378 : f32
    %213 = vector.broadcast %cst_168 : f32 to vector<8x288xf32>
    %214 = arith.addf %213, %212 : vector<8x288xf32>
    %215 = arith.mulf %207, %214 : vector<8x288xf32>
    %cst_169 = arith.constant -0.284496725 : f32
    %216 = vector.broadcast %cst_169 : f32 to vector<8x288xf32>
    %217 = arith.addf %216, %215 : vector<8x288xf32>
    %218 = arith.mulf %207, %217 : vector<8x288xf32>
    %cst_170 = arith.constant 0.254829586 : f32
    %219 = vector.broadcast %cst_170 : f32 to vector<8x288xf32>
    %220 = arith.addf %219, %218 : vector<8x288xf32>
    %221 = arith.mulf %207, %220 : vector<8x288xf32>
    %cst_171 = arith.constant 0.000000e+00 : f32
    %222 = vector.broadcast %cst_171 : f32 to vector<8x288xf32>
    %223 = arith.subf %222, %202 : vector<8x288xf32>
    %224 = arith.mulf %223, %202 : vector<8x288xf32>
    %225 = math.exp %224 : vector<8x288xf32>
    %226 = arith.mulf %221, %225 : vector<8x288xf32>
    %cst_172 = arith.constant 1.000000e+00 : f32
    %227 = vector.broadcast %cst_172 : f32 to vector<8x288xf32>
    %228 = arith.subf %227, %226 : vector<8x288xf32>
    %cst_173 = arith.constant 0.000000e+00 : f32
    %229 = vector.broadcast %cst_173 : f32 to vector<8x288xf32>
    %230 = arith.cmpf oge, %201, %229 : vector<8x288xf32>
    %cst_174 = arith.constant 0.000000e+00 : f32
    %231 = vector.broadcast %cst_174 : f32 to vector<8x288xf32>
    %232 = arith.subf %231, %228 : vector<8x288xf32>
    %233 = arith.select %230, %228, %232 : vector<8x288xi1>, vector<8x288xf32>
    %cst_175 = arith.constant 5.000000e-01 : f32
    %234 = vector.broadcast %cst_175 : f32 to vector<8x288xf32>
    %235 = arith.mulf %234, %199 : vector<8x288xf32>
    %cst_176 = arith.constant 1.000000e+00 : f32
    %236 = vector.broadcast %cst_176 : f32 to vector<8x288xf32>
    %237 = arith.addf %236, %233 : vector<8x288xf32>
    %238 = arith.mulf %235, %237 : vector<8x288xf32>
    %239 = arith.mulf %238, %0 : vector<8x288xf32>
    %240 = vector.extract_strided_slice %239 {offsets = [0, 0], sizes = [4, 288], strides = [1, 1]} : vector<8x288xf32> to vector<4x288xf32>
    %c0_177 = arith.constant 0 : index
    %c0_178 = arith.constant 0 : index
    %c0_179 = arith.constant 0 : index
    %241 = vector.load %arg9[%c0_177, %c0_178, %c0_179] : memref<1x4x288xf32, #tpu.memory_space<vmem>>, vector<1x4x288xf32>
    %242 = vector.shape_cast %241 : vector<1x4x288xf32> to vector<4x288xf32>
    %243 = vector.shape_cast %240 : vector<4x288xf32> to vector<1x4x288xf32>
    tpu.vector_store %arg9[%c0_177, %c0_178, %c0_179], %243 {strides = array<i32>} : memref<1x4x288xf32, #tpu.memory_space<vmem>>, vector<1x4x288xf32>,
    return
  }
  func.func @transform_0(%arg0: i32) -> (i32, i32, i32) {
    %c0_i32 = arith.constant 0 : i32
    %c0_i32_0 = arith.constant 0 : i32
    %c0_i32_1 = arith.constant 0 : i32
    return %arg0, %c0_i32, %c0_i32_0 : i32, i32, i32
  }
  func.func @transform_1(%arg0: i32) -> (i32, i32, i32) {
    %c0_i32 = arith.constant 0 : i32
    %c0_i32_0 = arith.constant 0 : i32
    %c0_i32_1 = arith.constant 0 : i32
    %c0_i32_2 = arith.constant 0 : i32
    return %c0_i32, %c0_i32_0, %c0_i32_1 : i32, i32, i32
  }
  func.func @transform_2(%arg0: i32) -> (i32, i32, i32) {
    %c0_i32 = arith.constant 0 : i32
    %c0_i32_0 = arith.constant 0 : i32
    %c0_i32_1 = arith.constant 0 : i32
    %c0_i32_2 = arith.constant 0 : i32
    return %c0_i32, %c0_i32_0, %c0_i32_1 : i32, i32, i32
  }
  func.func @transform_3(%arg0: i32) -> (i32, i32) {
    %c0_i32 = arith.constant 0 : i32
    %c0_i32_0 = arith.constant 0 : i32
    %c0_i32_1 = arith.constant 0 : i32
    return %c0_i32, %c0_i32_0 : i32, i32
  }
  func.func @transform_4(%arg0: i32) -> (i32, i32, i32) {
    %c0_i32 = arith.constant 0 : i32
    %c0_i32_0 = arith.constant 0 : i32
    %c0_i32_1 = arith.constant 0 : i32
    %c0_i32_2 = arith.constant 0 : i32
    return %c0_i32, %c0_i32_0, %c0_i32_1 : i32, i32, i32
  }
  func.func @transform_5(%arg0: i32) -> (i32, i32, i32) {
    %c0_i32 = arith.constant 0 : i32
    %c0_i32_0 = arith.constant 0 : i32
    %c0_i32_1 = arith.constant 0 : i32
    %c0_i32_2 = arith.constant 0 : i32
    return %c0_i32, %c0_i32_0, %c0_i32_1 : i32, i32, i32
  }
  func.func @transform_6(%arg0: i32) -> (i32, i32, i32, i32) {
    %c0_i32 = arith.constant 0 : i32
    %c0_i32_0 = arith.constant 0 : i32
    %c0_i32_1 = arith.constant 0 : i32
    %c0_i32_2 = arith.constant 0 : i32
    %c0_i32_3 = arith.constant 0 : i32
    return %c0_i32, %c0_i32_0, %c0_i32_1, %c0_i32_2 : i32, i32, i32, i32
  }
  func.func @transform_7(%arg0: i32) -> (i32, i32) {
    %c0_i32 = arith.constant 0 : i32
    %c0_i32_0 = arith.constant 0 : i32
    %c0_i32_1 = arith.constant 0 : i32
    return %c0_i32, %c0_i32_0 : i32, i32
  }
  func.func @transform_8(%arg0: i32) -> (i32, i32, i32) {
    %c0_i32 = arith.constant 0 : i32
    %c0_i32_0 = arith.constant 0 : i32
    %c0_i32_1 = arith.constant 0 : i32
    return %arg0, %c0_i32, %c0_i32_0 : i32, i32, i32
  }
}

</mosaic_0001>

<llo_original>
// kernel: tpu_custom_call.1
$region0: #{tpu_custom_call.1}
  #allocation0 [shape = 'u32[]', space=smem, size = 0x4, offset = 0x4, fixed_abs, tag = 'smem constant byte address 0x4 - core index']
  #allocation1 [shape = 'u32[72,128]{1,0:T(1,128)}', space=vmem, size = 0x9000, scoped, tag = 'internal scratch']
  #allocation2 [shape = 'f32[8,360]{1,0:T(8,128)}', space=vmem, size = 0x3000, scoped, tag = 'scratch operand']
  %s0 = inlined_call_operand.vmem [shape: f32[2,8,110], index: 0, kind: input, shape index: {}]
  %s1 = inlined_call_operand.vmem [shape: f32[4,8,32], index: 1, kind: input, shape index: {}]
  %s2 = inlined_call_operand.hbm [shape: f32[4,80,288], index: 2, kind: input, shape index: {}]
  %s3 = inlined_call_operand.hbm [shape: f32[8,288], index: 3, kind: input, shape index: {}]
  %s4 = inlined_call_operand.hbm [shape: f32[2,8,72], index: 4, kind: input, shape index: {}]
  %s5 = inlined_call_operand.vmem [shape: f32[2,8,1], index: 5, kind: input, shape index: {}]
  %s6 = inlined_call_operand.vmem [shape: f32[2,2,8,1], index: 6, kind: input, shape index: {}]
  %s7 = inlined_call_operand.hbm [shape: f32[8,288], index: 7, kind: input, shape index: {}]
  %s8 = inlined_call_operand.hbm [shape: f32[2,4,288], index: 8, kind: output, shape index: {}]
  %s9 = sld [smem:[#allocation0]]
  $region81: #{tpu_custom_call.1} parent=0
    _
  %s11 = ssub.s32 1, %s9
  %s12 = scalar_select 0, %s11, %s9
  $region1: #{tpu_custom_call.1} parent=0
    #allocation3 [shape = 'u8[491520]{0}', space=vmem, size = 0x78000, scoped, tag = 'input window, operand 2, single buffered']
    #allocation4 [shape = 's32[2]{0}', space=sflag, size = 0x8, scoped, tag = 'scoped memory for tpu_custom_call.1']
    #allocation5 [shape = 's32[2]{0}', space=sflag, size = 0x8, scoped, tag = 'scoped memory for tpu_custom_call.1']
    #allocation6 [shape = 'u8[12288]{0}', space=vmem, size = 0x3000, scoped, tag = 'input window, operand 3, single buffered']
    #allocation7 [shape = 's32[1]{0}', space=sflag, size = 0x4, scoped, tag = 'scoped memory for tpu_custom_call.1']
    #allocation8 [shape = 'u8[8192]{0}', space=vmem, size = 0x2000, scoped, tag = 'input window, operand 4, single buffered']
    #allocation9 [shape = 'u8[12288]{0}', space=vmem, size = 0x3000, scoped, tag = 'input window, operand 7, single buffered']
    #allocation10 [shape = 's32[1]{0}', space=sflag, size = 0x4, scoped, tag = 'scoped memory for tpu_custom_call.1']
    #allocation11 [shape = 'u8[12288]{0}', space=vmem, size = 0x3000, scoped, tag = 'output window, operand 0']
    %13 = vsyncpa [#allocation4], 0
    %14 = vsyncpa [#allocation7], 0
    %15 = vsyncpa [#allocation10], 0
    %16 = vsyncpa [#allocation5], 0
    %s17 = scalar_lea.sflag [#allocation5], 1
    %18 = vsyncpa %s17, 0
    loop: start=0, step=1, limit=4
    $region2: #{tpu_custom_call.1} parent=1 // loop_pre_header
      _
    $region3: #{tpu_custom_call.1} parent=1 // loop_header
      %s20 = sphi 0, %s24
      %p21 = scmp.ge.s32.totalorder %s20, 4
      %s30 = sphi 0, %s32
      %s33 = sphi 0, %s30
      %s34 = sphi 0, %s33
      %s50 = sphi 0, %s34
      %s54 = sphi 0, %s54
      %s56 = sphi 0, %s54
      %s57 = sphi 0, %s56
      %s71 = sphi 0, %s57
      %s75 = sphi 0, %s75
      %s77 = sphi 0, %s75
      %s78 = sphi 0, %s77
      %s92 = sphi 0, %s78
      %s96 = sphi 0, %s96
      %s98 = sphi 0, %s96
      %s99 = sphi 0, %s98
      %s113 = sphi 0, %s99
      %s117 = sphi 0, %s117
      %s119 = sphi 0, %s117
      %s120 = sphi 0, %s119
      %s134 = sphi 0, %s120
      %s138 = sphi 0, %s138
      %s140 = sphi 0, %s138
      %s141 = sphi 0, %s140
      %s155 = sphi 0, %s141
      %s159 = sphi 0, %s159
      %s161 = sphi 0, %s159
      %s162 = sphi 0, %s161
      %s176 = sphi 0, %s162
      %s180 = sphi 0, %s180
      %s182 = sphi 0, %s180
      %s183 = sphi 0, %s182
      %s197 = sphi 0, %s183
      %s203 = sphi 0, %s205
      %s206 = sphi 0, %s203
      %s207 = sphi 0, %s206
      %s223 = sphi 0, %s207
    $region4: #{tpu_custom_call.1} parent=1 // loop_header_branch
      %23 = sbr.rel (%p21) target = $region8
    $region5: #{tpu_custom_call.1} parent=1 // loop_body
      %s25 = ssub.s32 %s20, 1
      %s26 = ssub.s32 %s20, 2
      %s27 = sadd.s32 %s20, 1
      %s28 = ssub.s32 %s20, %s27
      %p29 = scmp.eq.s32.totalorder %s28, 0
      %s31 = sadd.s32 %s30, 1
      %s32 = scalar_select %p29, %s30, %s31
      %p35 = pneg %p29
      %p36 = scmp.eq.s32.totalorder %s20, 1
      %p37 = por %p35, %p36
      %p38 = scmp.ne.s32.totalorder %s30, %s33
      %p39 = scmp.eq.s32.totalorder %s20, 0
      %p40 = por %p38, %p39
      %p41 = scmp.ne.s32.totalorder %s30, %s33
      %p42 = scmp.eq.s32.totalorder %s25, 1
      %p43 = por %p41, %p42
      %p44 = scmp.ne.s32.totalorder %s33, %s34
      %p45 = scmp.eq.s32.totalorder %s25, 0
      %p46 = por %p44, %p45
      %p47 = scmp.ne.s32.totalorder %s33, %s34
      %p48 = scmp.eq.s32.totalorder %s26, 1
      %p49 = por %p47, %p48
      %p51 = scmp.ne.s32.totalorder %s34, %s50
      %p52 = scmp.eq.s32.totalorder %s26, 0
      %p53 = por %p51, %p52
      %s55 = sadd.s32 %s54, 1
      %p58 = scmp.eq.s32.totalorder %s20, 1
      %p59 = scmp.ne.s32.totalorder %s54, %s56
      %p60 = scmp.eq.s32.totalorder %s20, 0
      %p61 = por %p59, %p60
      %p62 = scmp.ne.s32.totalorder %s54, %s56
      %p63 = scmp.eq.s32.totalorder %s25, 1
      %p64 = por %p62, %p63
      %p65 = scmp.ne.s32.totalorder %s56, %s57
      %p66 = scmp.eq.s32.totalorder %s25, 0
      %p67 = por %p65, %p66
      %p68 = scmp.ne.s32.totalorder %s56, %s57
      %p69 = scmp.eq.s32.totalorder %s26, 1
      %p70 = por %p68, %p69
      %p72 = scmp.ne.s32.totalorder %s57, %s71
      %p73 = scmp.eq.s32.totalorder %s26, 0
      %p74 = por %p72, %p73
      %s76 = sadd.s32 %s75, 1
      %p79 = scmp.eq.s32.totalorder %s20, 1
      %p80 = scmp.ne.s32.totalorder %s75, %s77
      %p81 = scmp.eq.s32.totalorder %s20, 0
      %p82 = por %p80, %p81
      %p83 = scmp.ne.s32.totalorder %s75, %s77
      %p84 = scmp.eq.s32.totalorder %s25, 1
      %p85 = por %p83, %p84
      %p86 = scmp.ne.s32.totalorder %s77, %s78
      %p87 = scmp.eq.s32.totalorder %s25, 0
      %p88 = por %p86, %p87
      %p89 = scmp.ne.s32.totalorder %s77, %s78
      %p90 = scmp.eq.s32.totalorder %s26, 1
      %p91 = por %p89, %p90
      %p93 = scmp.ne.s32.totalorder %s78, %s92
      %p94 = scmp.eq.s32.totalorder %s26, 0
      %p95 = por %p93, %p94
      %s97 = sadd.s32 %s96, 1
      %p100 = scmp.eq.s32.totalorder %s20, 1
      %p101 = scmp.ne.s32.totalorder %s96, %s98
      %p102 = scmp.eq.s32.totalorder %s20, 0
      %p103 = por %p101, %p102
      %p104 = scmp.ne.s32.totalorder %s96, %s98
      %p105 = scmp.eq.s32.totalorder %s25, 1
      %p106 = por %p104, %p105
      %p107 = scmp.ne.s32.totalorder %s98, %s99
      %p108 = scmp.eq.s32.totalorder %s25, 0
      %p109 = por %p107, %p108
      %p110 = scmp.ne.s32.totalorder %s98, %s99
      %p111 = scmp.eq.s32.totalorder %s26, 1
      %p112 = por %p110, %p111
      %p114 = scmp.ne.s32.totalorder %s99, %s113
      %p115 = scmp.eq.s32.totalorder %s26, 0
      %p116 = por %p114, %p115
      %s118 = sadd.s32 %s117, 1
      %p121 = scmp.eq.s32.totalorder %s20, 1
      %p122 = scmp.ne.s32.totalorder %s117, %s119
      %p123 = scmp.eq.s32.totalorder %s20, 0
      %p124 = por %p122, %p123
      %p125 = scmp.ne.s32.totalorder %s117, %s119
      %p126 = scmp.eq.s32.totalorder %s25, 1
      %p127 = por %p125, %p126
      %p128 = scmp.ne.s32.totalorder %s119, %s120
      %p129 = scmp.eq.s32.totalorder %s25, 0
      %p130 = por %p128, %p129
      %p131 = scmp.ne.s32.totalorder %s119, %s120
      %p132 = scmp.eq.s32.totalorder %s26, 1
      %p133 = por %p131, %p132
      %p135 = scmp.ne.s32.totalorder %s120, %s134
      %p136 = scmp.eq.s32.totalorder %s26, 0
      %p137 = por %p135, %p136
      %s139 = sadd.s32 %s138, 1
      %p142 = scmp.eq.s32.totalorder %s20, 1
      %p143 = scmp.ne.s32.totalorder %s138, %s140
      %p144 = scmp.eq.s32.totalorder %s20, 0
      %p145 = por %p143, %p144
      %p146 = scmp.ne.s32.totalorder %s138, %s140
      %p147 = scmp.eq.s32.totalorder %s25, 1
      %p148 = por %p146, %p147
      %p149 = scmp.ne.s32.totalorder %s140, %s141
      %p150 = scmp.eq.s32.totalorder %s25, 0
      %p151 = por %p149, %p150
      %p152 = scmp.ne.s32.totalorder %s140, %s141
      %p153 = scmp.eq.s32.totalorder %s26, 1
      %p154 = por %p152, %p153
      %p156 = scmp.ne.s32.totalorder %s141, %s155
      %p157 = scmp.eq.s32.totalorder %s26, 0
      %p158 = por %p156, %p157
      %s160 = sadd.s32 %s159, 1
      %p163 = scmp.eq.s32.totalorder %s20, 1
      %p164 = scmp.ne.s32.totalorder %s159, %s161
      %p165 = scmp.eq.s32.totalorder %s20, 0
      %p166 = por %p164, %p165
      %p167 = scmp.ne.s32.totalorder %s159, %s161
      %p168 = scmp.eq.s32.totalorder %s25, 1
      %p169 = por %p167, %p168
      %p170 = scmp.ne.s32.totalorder %s161, %s162
      %p171 = scmp.eq.s32.totalorder %s25, 0
      %p172 = por %p170, %p171
      %p173 = scmp.ne.s32.totalorder %s161, %s162
      %p174 = scmp.eq.s32.totalorder %s26, 1
      %p175 = por %p173, %p174
      %p177 = scmp.ne.s32.totalorder %s162, %s176
      %p178 = scmp.eq.s32.totalorder %s26, 0
      %p179 = por %p177, %p178
      %s181 = sadd.s32 %s180, 1
      %p184 = scmp.eq.s32.totalorder %s20, 1
      %p185 = scmp.ne.s32.totalorder %s180, %s182
      %p186 = scmp.eq.s32.totalorder %s20, 0
      %p187 = por %p185, %p186
      %p188 = scmp.ne.s32.totalorder %s180, %s182
      %p189 = scmp.eq.s32.totalorder %s25, 1
      %p190 = por %p188, %p189
      %p191 = scmp.ne.s32.totalorder %s182, %s183
      %p192 = scmp.eq.s32.totalorder %s25, 0
      %p193 = por %p191, %p192
      %p194 = scmp.ne.s32.totalorder %s182, %s183
      %p195 = scmp.eq.s32.totalorder %s26, 1
      %p196 = por %p194, %p195
      %p198 = scmp.ne.s32.totalorder %s183, %s197
      %p199 = scmp.eq.s32.totalorder %s26, 0
      %p200 = por %p198, %p199
      %s201 = ssub.s32 %s20, %s27
      %p202 = scmp.eq.s32.totalorder %s201, 0
      %s204 = sadd.s32 %s203, 1
      %s205 = scalar_select %p202, %s203, %s204
      %p208 = pneg %p202
      %p209 = scmp.eq.s32.totalorder %s20, 1
      %p210 = por %p208, %p209
      %p211 = scmp.ne.s32.totalorder %s203, %s206
      %p212 = scmp.eq.s32.totalorder %s20, 0
      %p213 = por %p211, %p212
      %p214 = scmp.ne.s32.totalorder %s203, %s206
      %p215 = scmp.eq.s32.totalorder %s25, 1
      %p216 = por %p214, %p215
      %p217 = scmp.ne.s32.totalorder %s206, %s207
      %p218 = scmp.eq.s32.totalorder %s25, 0
      %p219 = por %p217, %p218
      %p220 = scmp.ne.s32.totalorder %s206, %s207
      %p221 = scmp.eq.s32.totalorder %s26, 1
      %p222 = por %p220, %p221
      %p224 = scmp.ne.s32.totalorder %s207, %s223
      %p225 = scmp.eq.s32.totalorder %s26, 0
      %p226 = por %p224, %p225
      %p227 = scmp.le.s32.totalorder 1, %s20
      %p228 = scmp.lt.s32.totalorder %s20, 3
      %p229 = pnand %p227, %p228
      %p230 = pneg %p229
      // Predicated region
      $region9: #{tpu_custom_call.1} parent=5 // pred_check
        _
      $region10: #{tpu_custom_call.1} parent=5 // pred_check_branch
        %232 = sbr.rel (%p229) target = $region12
      $region11: #{tpu_custom_call.1} parent=5 // pred_region
        %s233 = ssub.s32 %s20, 1
        // Predicated region
        $region13: #{tpu_custom_call.1} parent=11 // pred_check
          %p234 = pneg %p67
        $region14: #{tpu_custom_call.1} parent=11 // pred_check_branch
          %236 = sbr.rel (%p234) target = $region16
        $region15: #{tpu_custom_call.1} parent=11 // pred_region
          _
        $region16: #{tpu_custom_call.1} parent=11 // pred_fallthru
          _
        // Predicated region
        $region17: #{tpu_custom_call.1} parent=11 // pred_check
          %p237 = pneg %p88
        $region18: #{tpu_custom_call.1} parent=11 // pred_check_branch
          %239 = sbr.rel (%p237) target = $region20
        $region19: #{tpu_custom_call.1} parent=11 // pred_region
          %241 = vsyncadd [#allocation4], 0
          %s242 = sshll.u32 %s2, 4
          %s243 = int_to_ptr.hbm [resolvable:$true] %s242
          %s244 = sshll.u32 [#allocation3], 4
          %s245 = int_to_ptr.vmem [resolvable:$true] %s244
          %250 = dma.hbm_to_vmem [thread:$0]  %s243, 15360, %s245, [#allocation4], 384, 384, 24
        $region20: #{tpu_custom_call.1} parent=11 // pred_fallthru
          _
        // Predicated region
        $region21: #{tpu_custom_call.1} parent=11 // pred_check
          %p251 = pneg %p109
        $region22: #{tpu_custom_call.1} parent=11 // pred_check_branch
          %253 = sbr.rel (%p251) target = $region24
        $region23: #{tpu_custom_call.1} parent=11 // pred_region
          %255 = vsyncadd [#allocation7], 0
          %s257 = sshll.u32 %s3, 4
          %s258 = int_to_ptr.hbm [resolvable:$true] %s257
          %s259 = sshll.u32 [#allocation6], 4
          %s260 = int_to_ptr.vmem [resolvable:$true] %s259
          %262 = dma.hbm_to_vmem [thread:$0]  %s258, 384, %s260, [#allocation7]
        $region24: #{tpu_custom_call.1} parent=11 // pred_fallthru
          _
        // Predicated region
        $region25: #{tpu_custom_call.1} parent=11 // pred_check
          %p263 = pneg %p130
        $region26: #{tpu_custom_call.1} parent=11 // pred_check_branch
          %265 = sbr.rel (%p263) target = $region28
        $region27: #{tpu_custom_call.1} parent=11 // pred_region
          %267 = vsyncadd [#allocation7], 0
          %s268 = sshll.u32 %s4, 4
          %s269 = int_to_ptr.hbm [resolvable:$true] %s268
          %s270 = sshll.u32 [#allocation8], 4
          %s271 = int_to_ptr.vmem [resolvable:$true] %s270
          %276 = dma.hbm_to_vmem [thread:$0]  %s269, 256, %s271, [#allocation7], 128, 128, 8
        $region28: #{tpu_custom_call.1} parent=11 // pred_fallthru
          _
        // Predicated region
        $region29: #{tpu_custom_call.1} parent=11 // pred_check
          %p277 = pneg %p151
        $region30: #{tpu_custom_call.1} parent=11 // pred_check_branch
          %279 = sbr.rel (%p277) target = $region32
        $region31: #{tpu_custom_call.1} parent=11 // pred_region
          _
        $region32: #{tpu_custom_call.1} parent=11 // pred_fallthru
          _
        // Predicated region
        $region33: #{tpu_custom_call.1} parent=11 // pred_check
          %p280 = pneg %p172
        $region34: #{tpu_custom_call.1} parent=11 // pred_check_branch
          %282 = sbr.rel (%p280) target = $region36
        $region35: #{tpu_custom_call.1} parent=11 // pred_region
          _
        $region36: #{tpu_custom_call.1} parent=11 // pred_fallthru
          _
        // Predicated region
        $region37: #{tpu_custom_call.1} parent=11 // pred_check
          %p283 = pneg %p193
        $region38: #{tpu_custom_call.1} parent=11 // pred_check_branch
          %285 = sbr.rel (%p283) target = $region40
        $region39: #{tpu_custom_call.1} parent=11 // pred_region
          %287 = vsyncadd [#allocation10], 0
          %s289 = sshll.u32 %s7, 4
          %s290 = int_to_ptr.hbm [resolvable:$true] %s289
          %s291 = sshll.u32 [#allocation9], 4
          %s292 = int_to_ptr.vmem [resolvable:$true] %s291
          %294 = dma.hbm_to_vmem [thread:$0]  %s290, 384, %s292, [#allocation10]
        $region40: #{tpu_custom_call.1} parent=11 // pred_fallthru
          _
      $region12: #{tpu_custom_call.1} parent=5 // pred_fallthru
        _
      %p295 = scmp.lt.s32.totalorder %s20, 2
      // Predicated region
      $region41: #{tpu_custom_call.1} parent=5 // pred_check
        %p296 = pneg %p295
      $region42: #{tpu_custom_call.1} parent=5 // pred_check_branch
        %298 = sbr.rel (%p296) target = $region44
      $region43: #{tpu_custom_call.1} parent=5 // pred_region
        // Predicated region
        $region45: #{tpu_custom_call.1} parent=43 // pred_check
          %p299 = pneg %p40
        $region46: #{tpu_custom_call.1} parent=43 // pred_check_branch
          %301 = sbr.rel (%p299) target = $region48
        $region47: #{tpu_custom_call.1} parent=43 // pred_region
          %p302 = scmp.lt.s32.totalorder %s20, 1
          %s303 = scalar_select %p302, %s20, 1
          %s304 = smul.addr %s303, 8
          %s305 = scalar_lea.vmem %s0, %s304
        $region48: #{tpu_custom_call.1} parent=43 // pred_fallthru
          _
      $region44: #{tpu_custom_call.1} parent=5 // pred_fallthru
        _
      %p306 = scmp.le.s32.totalorder 1, %s20
      %p307 = scmp.lt.s32.totalorder %s20, 3
      %p308 = pnand %p306, %p307
      %p309 = pneg %p308
      // Predicated region
      $region49: #{tpu_custom_call.1} parent=5 // pred_check
        _
      $region50: #{tpu_custom_call.1} parent=5 // pred_check_branch
        %311 = sbr.rel (%p308) target = $region52
      $region51: #{tpu_custom_call.1} parent=5 // pred_region
        %s312 = ssub.s32 %s20, 1
        // Predicated region
        $region53: #{tpu_custom_call.1} parent=51 // pred_check
          %p313 = pneg %p88
        $region54: #{tpu_custom_call.1} parent=51 // pred_check_branch
          %315 = sbr.rel (%p313) target = $region56
        $region55: #{tpu_custom_call.1} parent=51 // pred_region
          %317 = dma.done [#allocation4], 15360
        $region56: #{tpu_custom_call.1} parent=51 // pred_fallthru
          _
        // Predicated region
        $region57: #{tpu_custom_call.1} parent=51 // pred_check
          %p318 = pneg %p109
        $region58: #{tpu_custom_call.1} parent=51 // pred_check_branch
          %320 = sbr.rel (%p318) target = $region60
        $region59: #{tpu_custom_call.1} parent=51 // pred_region
          %322 = dma.done [#allocation7], 384
        $region60: #{tpu_custom_call.1} parent=51 // pred_fallthru
          _
        // Predicated region
        $region61: #{tpu_custom_call.1} parent=51 // pred_check
          %p323 = pneg %p130
        $region62: #{tpu_custom_call.1} parent=51 // pred_check_branch
          %325 = sbr.rel (%p323) target = $region64
        $region63: #{tpu_custom_call.1} parent=51 // pred_region
          %327 = dma.done [#allocation7], 256
        $region64: #{tpu_custom_call.1} parent=51 // pred_fallthru
          _
        // Predicated region
        $region65: #{tpu_custom_call.1} parent=51 // pred_check
          %p328 = pneg %p193
        $region66: #{tpu_custom_call.1} parent=51 // pred_check_branch
          %330 = sbr.rel (%p328) target = $region68
        $region67: #{tpu_custom_call.1} parent=51 // pred_region
          %332 = dma.done [#allocation10], 384
        $region68: #{tpu_custom_call.1} parent=51 // pred_fallthru
          _
        %p333 = scmp.lt.s32.totalorder %s25, 1
        %s334 = scalar_select %p333, %s25, 1
        %s335 = smul.addr %s334, 8
        %s336 = scalar_lea.vmem %s0, %s335
        %p337 = pneg %p46
        %p338 = pneg %p43
        %p339 = pneg %p67
        %p340 = pneg %p64
        %p341 = pneg %p88
        %p342 = pneg %p85
        %p343 = pneg %p109
        %p344 = pneg %p106
        %p345 = pneg %p130
        %p346 = pneg %p127
        %p347 = pneg %p151
        %p348 = pneg %p148
        %p349 = pneg %p172
        %p350 = pneg %p169
        %p351 = pneg %p193
        %p352 = pneg %p190
        %p353 = pneg %p219
        %p354 = pneg %p216
        %s355 = sand.u32 %s206, 1
        %s356 = scalar_lea.sflag [#allocation5], %s355
        %s357 = sand.u32 %s206, 1
        %s358 = smul.addr %s357, 12
        %s359 = scalar_lea.vmem [#allocation11], %s358
        %p360 = scmp.lt.s32.totalorder %s25, 1
        %s361 = scalar_select %p360, %s25, 1
        %s362 = smul.addr %s361, 8
        %s363 = scalar_lea.vmem %s0, %s362
        %v364 = vld [vmem:[#allocation9] sm:$0xff]
        %v365 = vld [vmem:[#allocation9 + $0x8] sm:$0xff]
        %v366 = vld [vmem:[#allocation9 + $0x10] sm:$0xff]
        %v367 = vld [vmem:[#allocation6] sm:$0xff]
        %v368 = vld [vmem:[#allocation6 + $0x8] sm:$0xff]
        %v369 = vld [vmem:[#allocation6 + $0x10] sm:$0xff]
        %v370 = vld [vmem:[%s363] sm:$0xff]
        %372 = vrot.lane.b32.xlu0 %v370, 127
        %v373 = vpop.permute.xlu0 %372
        %375 = vrot.lane.b32.xlu0 %v370, 118
        %v376 = vpop.permute.xlu0 %375
        %378 = vrot.lane.b32.xlu0 %v370, 117
        %v379 = vpop.permute.xlu0 %378
        %v381 = vld [vmem:[%s1] sm:$0xff]
        %vm382 = vcmask 261120
        %v384 = vsel %vm382, %v381, 0
        %386 = vmatpush.msra.mxu0 0.0
        %387 = vmatpush.msra.mxu0 0.0
        %388 = vmatpush.msra.mxu0 0.0
        %389 = vmatpush.msra.mxu0 0.0
        %390 = vmatpush.msra.mxu0 0.0
        %391 = vmatpush.msra.mxu0 0.0
        %392 = vmatpush.msra.mxu0 0.0
        %393 = vmatpush.msra.mxu0 0.0
        %394 = vmatpush.msra.mxu0 0.0
        %395 = vmatpush.msra.mxu0 0.0
        %396 = vmatpush.msra.mxu0 0.0
        %397 = vmatpush.msra.mxu0 0.0
        %398 = vmatpush.msra.mxu0 %v379
        %399 = vmatpush.msra.mxu0 %v376
        %400 = vmatpush.msra.mxu0 %v373
        %401 = vmatpush.msra.mxu0 %v370
        %402 = vmatmul.f32.gmra.mxu0 %v384
        %v403 = vpop.f32.mrf.mxu0
        %v404 = vadd.f32 0.0, %v403
        %405 = vdwg.mxu0
        %v406 = vld [vmem:[#allocation3] sm:$0xff]
        %v407 = vld [vmem:[#allocation3 + $0x8] sm:$0xff]
        %v408 = vld [vmem:[#allocation3 + $0x10] sm:$0xff]
        %v409 = vld [vmem:[#allocation3 + $0x18] sm:$0xff]
        %v410 = vld [vmem:[#allocation3 + $0x20] sm:$0xff]
        %v411 = vld [vmem:[#allocation3 + $0x28] sm:$0xff]
        %v412 = vld [vmem:[#allocation3 + $0x30] sm:$0xff]
        %v413 = vld [vmem:[#allocation3 + $0x38] sm:$0xff]
        %v414 = vld [vmem:[#allocation3 + $0x40] sm:$0xff]
        %v415 = vld [vmem:[#allocation3 + $0x48] sm:$0xff]
        %v416 = vld [vmem:[#allocation3 + $0x50] sm:$0xff]
        %v417 = vld [vmem:[#allocation3 + $0x58] sm:$0xff]
        %v418 = vld [vmem:[#allocation3 + $0x60] sm:$0xff]
        %v419 = vld [vmem:[#allocation3 + $0x68] sm:$0xff]
        %v420 = vld [vmem:[#allocation3 + $0x70] sm:$0xff]
        %v421 = vld [vmem:[#allocation3 + $0x78] sm:$0xff]
        %v422 = vld [vmem:[#allocation3 + $0x80] sm:$0xff]
        %v423 = vld [vmem:[#allocation3 + $0x88] sm:$0xff]
        %v424 = vld [vmem:[#allocation3 + $0x90] sm:$0xff]
        %v425 = vld [vmem:[#allocation3 + $0x98] sm:$0xff]
        %v426 = vld [vmem:[#allocation3 + $0xa0] sm:$0xff]
        %v427 = vld [vmem:[#allocation3 + $0xa8] sm:$0xff]
        %v428 = vld [vmem:[#allocation3 + $0xb0] sm:$0xff]
        %v429 = vld [vmem:[#allocation3 + $0xb8] sm:$0xff]
        %v430 = vld [vmem:[#allocation3 + $0xc0] sm:$0xff]
        %v431 = vld [vmem:[#allocation3 + $0xc8] sm:$0xff]
        %v432 = vld [vmem:[#allocation3 + $0xd0] sm:$0xff]
        %v433 = vld [vmem:[#allocation3 + $0xd8] sm:$0xff]
        %v434 = vld [vmem:[#allocation3 + $0xe0] sm:$0xff]
        %v435 = vld [vmem:[#allocation3 + $0xe8] sm:$0xff]
        %vm436 = vcmask 654336
        %v438 = vsel %vm436, %v404, 0
        %440 = vmatpush.msra.mxu0 0.0
        %441 = vmatpush.msra.mxu0 0.0
        %442 = vmatpush.msra.mxu0 0.0
        %443 = vmatpush.msra.mxu0 0.0
        %444 = vmatpush.msra.mxu0 0.0
        %445 = vmatpush.msra.mxu0 0.0
        %446 = vmatpush.msra.mxu0 %v433
        %447 = vmatpush.msra.mxu0 %v430
        %448 = vmatpush.msra.mxu0 %v427
        %449 = vmatpush.msra.mxu0 %v424
        %450 = vmatpush.msra.mxu0 %v421
        %451 = vmatpush.msra.mxu0 %v418
        %452 = vmatpush.msra.mxu0 %v415
        %453 = vmatpush.msra.mxu0 %v412
        %454 = vmatpush.msra.mxu0 %v409
        %455 = vmatpush.msra.mxu0 %v406
        %456 = vmatmul.f32.gmra.mxu0 %v438
        %v457 = vpop.f32.mrf.mxu0
        %v458 = vadd.f32 0.0, %v457
        %459 = vdwg.mxu0
        %460 = vmatpush.msra.mxu0 0.0
        %461 = vmatpush.msra.mxu0 0.0
        %462 = vmatpush.msra.mxu0 0.0
        %463 = vmatpush.msra.mxu0 0.0
        %464 = vmatpush.msra.mxu0 0.0
        %465 = vmatpush.msra.mxu0 0.0
        %466 = vmatpush.msra.mxu0 %v434
        %467 = vmatpush.msra.mxu0 %v431
        %468 = vmatpush.msra.mxu0 %v428
        %469 = vmatpush.msra.mxu0 %v425
        %470 = vmatpush.msra.mxu0 %v422
        %471 = vmatpush.msra.mxu0 %v419
        %472 = vmatpush.msra.mxu0 %v416
        %473 = vmatpush.msra.mxu0 %v413
        %474 = vmatpush.msra.mxu0 %v410
        %475 = vmatpush.msra.mxu0 %v407
        %476 = vmatmul.f32.gmra.mxu0 %v438
        %v477 = vpop.f32.mrf.mxu0
        %v478 = vadd.f32 0.0, %v477
        %479 = vdwg.mxu0
        %480 = vmatpush.msra.mxu0 0.0
        %481 = vmatpush.msra.mxu0 0.0
        %482 = vmatpush.msra.mxu0 0.0
        %483 = vmatpush.msra.mxu0 0.0
        %484 = vmatpush.msra.mxu0 0.0
        %485 = vmatpush.msra.mxu0 0.0
        %486 = vmatpush.msra.mxu0 %v435
        %487 = vmatpush.msra.mxu0 %v432
        %488 = vmatpush.msra.mxu0 %v429
        %489 = vmatpush.msra.mxu0 %v426
        %490 = vmatpush.msra.mxu0 %v423
        %491 = vmatpush.msra.mxu0 %v420
        %492 = vmatpush.msra.mxu0 %v417
        %493 = vmatpush.msra.mxu0 %v414
        %494 = vmatpush.msra.mxu0 %v411
        %495 = vmatpush.msra.mxu0 %v408
        %496 = vmatmul.f32.gmra.mxu0 %v438
        %v497 = vpop.f32.mrf.mxu0
        %v498 = vadd.f32 0.0, %v497
        %499 = vdwg.mxu0
        %v500 = vadd.f32 %v367, %v458
        %v501 = vadd.f32 %v368, %v478
        %v502 = vadd.f32 %v369, %v498
        %s503 = scalar_lea.vmem %s1, 8
        %v504 = vld [vmem:[%s503] sm:$0xff]
        %505 = vrot.lane.b32.xlu0 %v373, 127
        %v506 = vpop.permute.xlu0 %505
        %507 = vrot.lane.b32.xlu0 %v376, 127
        %v508 = vpop.permute.xlu0 %507
        %509 = vrot.lane.b32.xlu0 %v379, 127
        %v510 = vpop.permute.xlu0 %509
        %v515 = vsel %vm382, %v504, 0
        %517 = vmatpush.msra.mxu0 0.0
        %518 = vmatpush.msra.mxu0 0.0
        %519 = vmatpush.msra.mxu0 0.0
        %520 = vmatpush.msra.mxu0 0.0
        %521 = vmatpush.msra.mxu0 0.0
        %522 = vmatpush.msra.mxu0 0.0
        %523 = vmatpush.msra.mxu0 0.0
        %524 = vmatpush.msra.mxu0 0.0
        %525 = vmatpush.msra.mxu0 0.0
        %526 = vmatpush.msra.mxu0 0.0
        %527 = vmatpush.msra.mxu0 0.0
        %528 = vmatpush.msra.mxu0 0.0
        %529 = vmatpush.msra.mxu0 %v510
        %530 = vmatpush.msra.mxu0 %v508
        %531 = vmatpush.msra.mxu0 %v506
        %532 = vmatpush.msra.mxu0 %v373
        %533 = vmatmul.f32.gmra.mxu0 %v515
        %v534 = vpop.f32.mrf.mxu0
        %v535 = vadd.f32 0.0, %v534
        %536 = vdwg.mxu0
        %s537 = scalar_lea.vmem [#allocation3], 240
        %v538 = vld [vmem:[%s537] sm:$0xff]
        %v539 = vld [vmem:[%s537 + $0x8] sm:$0xff]
        %v540 = vld [vmem:[%s537 + $0x10] sm:$0xff]
        %v541 = vld [vmem:[%s537 + $0x18] sm:$0xff]
        %v542 = vld [vmem:[%s537 + $0x20] sm:$0xff]
        %v543 = vld [vmem:[%s537 + $0x28] sm:$0xff]
        %v544 = vld [vmem:[%s537 + $0x30] sm:$0xff]
        %v545 = vld [vmem:[%s537 + $0x38] sm:$0xff]
        %v546 = vld [vmem:[%s537 + $0x40] sm:$0xff]
        %v547 = vld [vmem:[%s537 + $0x48] sm:$0xff]
        %v548 = vld [vmem:[%s537 + $0x50] sm:$0xff]
        %v549 = vld [vmem:[%s537 + $0x58] sm:$0xff]
        %v550 = vld [vmem:[%s537 + $0x60] sm:$0xff]
        %v551 = vld [vmem:[%s537 + $0x68] sm:$0xff]
        %v552 = vld [vmem:[%s537 + $0x70] sm:$0xff]
        %v553 = vld [vmem:[%s537 + $0x78] sm:$0xff]
        %v554 = vld [vmem:[%s537 + $0x80] sm:$0xff]
        %v555 = vld [vmem:[%s537 + $0x88] sm:$0xff]
        %v556 = vld [vmem:[%s537 + $0x90] sm:$0xff]
        %v557 = vld [vmem:[%s537 + $0x98] sm:$0xff]
        %v558 = vld [vmem:[%s537 + $0xa0] sm:$0xff]
        %v559 = vld [vmem:[%s537 + $0xa8] sm:$0xff]
        %v560 = vld [vmem:[%s537 + $0xb0] sm:$0xff]
        %v561 = vld [vmem:[%s537 + $0xb8] sm:$0xff]
        %v562 = vld [vmem:[%s537 + $0xc0] sm:$0xff]
        %v563 = vld [vmem:[%s537 + $0xc8] sm:$0xff]
        %v564 = vld [vmem:[%s537 + $0xd0] sm:$0xff]
        %v565 = vld [vmem:[%s537 + $0xd8] sm:$0xff]
        %v566 = vld [vmem:[%s537 + $0xe0] sm:$0xff]
        %v567 = vld [vmem:[%s537 + $0xe8] sm:$0xff]
        %v569 = vsel %vm436, %v535, 0
        %571 = vmatpush.msra.mxu0 0.0
        %572 = vmatpush.msra.mxu0 0.0
        %573 = vmatpush.msra.mxu0 0.0
        %574 = vmatpush.msra.mxu0 0.0
        %575 = vmatpush.msra.mxu0 0.0
        %576 = vmatpush.msra.mxu0 0.0
        %577 = vmatpush.msra.mxu0 %v565
        %578 = vmatpush.msra.mxu0 %v562
        %579 = vmatpush.msra.mxu0 %v559
        %580 = vmatpush.msra.mxu0 %v556
        %581 = vmatpush.msra.mxu0 %v553
        %582 = vmatpush.msra.mxu0 %v550
        %583 = vmatpush.msra.mxu0 %v547
        %584 = vmatpush.msra.mxu0 %v544
        %585 = vmatpush.msra.mxu0 %v541
        %586 = vmatpush.msra.mxu0 %v538
        %587 = vmatmul.f32.gmra.mxu0 %v569
        %v588 = vpop.f32.mrf.mxu0
        %v589 = vadd.f32 0.0, %v588
        %590 = vdwg.mxu0
        %591 = vmatpush.msra.mxu0 0.0
        %592 = vmatpush.msra.mxu0 0.0
        %593 = vmatpush.msra.mxu0 0.0
        %594 = vmatpush.msra.mxu0 0.0
        %595 = vmatpush.msra.mxu0 0.0
        %596 = vmatpush.msra.mxu0 0.0
        %597 = vmatpush.msra.mxu0 %v566
        %598 = vmatpush.msra.mxu0 %v563
        %599 = vmatpush.msra.mxu0 %v560
        %600 = vmatpush.msra.mxu0 %v557
        %601 = vmatpush.msra.mxu0 %v554
        %602 = vmatpush.msra.mxu0 %v551
        %603 = vmatpush.msra.mxu0 %v548
        %604 = vmatpush.msra.mxu0 %v545
        %605 = vmatpush.msra.mxu0 %v542
        %606 = vmatpush.msra.mxu0 %v539
        %607 = vmatmul.f32.gmra.mxu0 %v569
        %v608 = vpop.f32.mrf.mxu0
        %v609 = vadd.f32 0.0, %v608
        %610 = vdwg.mxu0
        %611 = vmatpush.msra.mxu0 0.0
        %612 = vmatpush.msra.mxu0 0.0
        %613 = vmatpush.msra.mxu0 0.0
        %614 = vmatpush.msra.mxu0 0.0
        %615 = vmatpush.msra.mxu0 0.0
        %616 = vmatpush.msra.mxu0 0.0
        %617 = vmatpush.msra.mxu0 %v567
        %618 = vmatpush.msra.mxu0 %v564
        %619 = vmatpush.msra.mxu0 %v561
        %620 = vmatpush.msra.mxu0 %v558
        %621 = vmatpush.msra.mxu0 %v555
        %622 = vmatpush.msra.mxu0 %v552
        %623 = vmatpush.msra.mxu0 %v549
        %624 = vmatpush.msra.mxu0 %v546
        %625 = vmatpush.msra.mxu0 %v543
        %626 = vmatpush.msra.mxu0 %v540
        %627 = vmatmul.f32.gmra.mxu0 %v569
        %v628 = vpop.f32.mrf.mxu0
        %v629 = vadd.f32 0.0, %v628
        %630 = vdwg.mxu0
        %v631 = vadd.f32 %v500, %v589
        %v632 = vadd.f32 %v501, %v609
        %v633 = vadd.f32 %v502, %v629
        %s634 = scalar_lea.vmem %s1, 16
        %v635 = vld [vmem:[%s634] sm:$0xff]
        %636 = vrot.lane.b32.xlu0 %v373, 118
        %v637 = vpop.permute.xlu0 %636
        %638 = vrot.lane.b32.xlu0 %v376, 118
        %v639 = vpop.permute.xlu0 %638
        %640 = vrot.lane.b32.xlu0 %v379, 118
        %v641 = vpop.permute.xlu0 %640
        %v646 = vsel %vm382, %v635, 0
        %648 = vmatpush.msra.mxu0 0.0
        %649 = vmatpush.msra.mxu0 0.0
        %650 = vmatpush.msra.mxu0 0.0
        %651 = vmatpush.msra.mxu0 0.0
        %652 = vmatpush.msra.mxu0 0.0
        %653 = vmatpush.msra.mxu0 0.0
        %654 = vmatpush.msra.mxu0 0.0
        %655 = vmatpush.msra.mxu0 0.0
        %656 = vmatpush.msra.mxu0 0.0
        %657 = vmatpush.msra.mxu0 0.0
        %658 = vmatpush.msra.mxu0 0.0
        %659 = vmatpush.msra.mxu0 0.0
        %660 = vmatpush.msra.mxu0 %v641
        %661 = vmatpush.msra.mxu0 %v639
        %662 = vmatpush.msra.mxu0 %v637
        %663 = vmatpush.msra.mxu0 %v376
        %664 = vmatmul.f32.gmra.mxu0 %v646
        %v665 = vpop.f32.mrf.mxu0
        %v666 = vadd.f32 0.0, %v665
        %667 = vdwg.mxu0
        %s668 = scalar_lea.vmem [#allocation3], 480
        %v669 = vld [vmem:[%s668] sm:$0xff]
        %v670 = vld [vmem:[%s668 + $0x8] sm:$0xff]
        %v671 = vld [vmem:[%s668 + $0x10] sm:$0xff]
        %v672 = vld [vmem:[%s668 + $0x18] sm:$0xff]
        %v673 = vld [vmem:[%s668 + $0x20] sm:$0xff]
        %v674 = vld [vmem:[%s668 + $0x28] sm:$0xff]
        %v675 = vld [vmem:[%s668 + $0x30] sm:$0xff]
        %v676 = vld [vmem:[%s668 + $0x38] sm:$0xff]
        %v677 = vld [vmem:[%s668 + $0x40] sm:$0xff]
        %v678 = vld [vmem:[%s668 + $0x48] sm:$0xff]
        %v679 = vld [vmem:[%s668 + $0x50] sm:$0xff]
        %v680 = vld [vmem:[%s668 + $0x58] sm:$0xff]
        %v681 = vld [vmem:[%s668 + $0x60] sm:$0xff]
        %v682 = vld [vmem:[%s668 + $0x68] sm:$0xff]
        %v683 = vld [vmem:[%s668 + $0x70] sm:$0xff]
        %v684 = vld [vmem:[%s668 + $0x78] sm:$0xff]
        %v685 = vld [vmem:[%s668 + $0x80] sm:$0xff]
        %v686 = vld [vmem:[%s668 + $0x88] sm:$0xff]
        %v687 = vld [vmem:[%s668 + $0x90] sm:$0xff]
        %v688 = vld [vmem:[%s668 + $0x98] sm:$0xff]
        %v689 = vld [vmem:[%s668 + $0xa0] sm:$0xff]
        %v690 = vld [vmem:[%s668 + $0xa8] sm:$0xff]
        %v691 = vld [vmem:[%s668 + $0xb0] sm:$0xff]
        %v692 = vld [vmem:[%s668 + $0xb8] sm:$0xff]
        %v693 = vld [vmem:[%s668 + $0xc0] sm:$0xff]
        %v694 = vld [vmem:[%s668 + $0xc8] sm:$0xff]
        %v695 = vld [vmem:[%s668 + $0xd0] sm:$0xff]
        %v696 = vld [vmem:[%s668 + $0xd8] sm:$0xff]
        %v697 = vld [vmem:[%s668 + $0xe0] sm:$0xff]
        %v698 = vld [vmem:[%s668 + $0xe8] sm:$0xff]
        %v700 = vsel %vm436, %v666, 0
        %702 = vmatpush.msra.mxu0 0.0
        %703 = vmatpush.msra.mxu0 0.0
        %704 = vmatpush.msra.mxu0 0.0
        %705 = vmatpush.msra.mxu0 0.0
        %706 = vmatpush.msra.mxu0 0.0
        %707 = vmatpush.msra.mxu0 0.0
        %708 = vmatpush.msra.mxu0 %v696
        %709 = vmatpush.msra.mxu0 %v693
        %710 = vmatpush.msra.mxu0 %v690
        %711 = vmatpush.msra.mxu0 %v687
        %712 = vmatpush.msra.mxu0 %v684
        %713 = vmatpush.msra.mxu0 %v681
        %714 = vmatpush.msra.mxu0 %v678
        %715 = vmatpush.msra.mxu0 %v675
        %716 = vmatpush.msra.mxu0 %v672
        %717 = vmatpush.msra.mxu0 %v669
        %718 = vmatmul.f32.gmra.mxu0 %v700
        %v719 = vpop.f32.mrf.mxu0
        %v720 = vadd.f32 0.0, %v719
        %721 = vdwg.mxu0
        %722 = vmatpush.msra.mxu0 0.0
        %723 = vmatpush.msra.mxu0 0.0
        %724 = vmatpush.msra.mxu0 0.0
        %725 = vmatpush.msra.mxu0 0.0
        %726 = vmatpush.msra.mxu0 0.0
        %727 = vmatpush.msra.mxu0 0.0
        %728 = vmatpush.msra.mxu0 %v697
        %729 = vmatpush.msra.mxu0 %v694
        %730 = vmatpush.msra.mxu0 %v691
        %731 = vmatpush.msra.mxu0 %v688
        %732 = vmatpush.msra.mxu0 %v685
        %733 = vmatpush.msra.mxu0 %v682
        %734 = vmatpush.msra.mxu0 %v679
        %735 = vmatpush.msra.mxu0 %v676
        %736 = vmatpush.msra.mxu0 %v673
        %737 = vmatpush.msra.mxu0 %v670
        %738 = vmatmul.f32.gmra.mxu0 %v700
        %v739 = vpop.f32.mrf.mxu0
        %v740 = vadd.f32 0.0, %v739
        %741 = vdwg.mxu0
        %742 = vmatpush.msra.mxu0 0.0
        %743 = vmatpush.msra.mxu0 0.0
        %744 = vmatpush.msra.mxu0 0.0
        %745 = vmatpush.msra.mxu0 0.0
        %746 = vmatpush.msra.mxu0 0.0
        %747 = vmatpush.msra.mxu0 0.0
        %748 = vmatpush.msra.mxu0 %v698
        %749 = vmatpush.msra.mxu0 %v695
        %750 = vmatpush.msra.mxu0 %v692
        %751 = vmatpush.msra.mxu0 %v689
        %752 = vmatpush.msra.mxu0 %v686
        %753 = vmatpush.msra.mxu0 %v683
        %754 = vmatpush.msra.mxu0 %v680
        %755 = vmatpush.msra.mxu0 %v677
        %756 = vmatpush.msra.mxu0 %v674
        %757 = vmatpush.msra.mxu0 %v671
        %758 = vmatmul.f32.gmra.mxu0 %v700
        %v759 = vpop.f32.mrf.mxu0
        %v760 = vadd.f32 0.0, %v759
        %761 = vdwg.mxu0
        %v762 = vadd.f32 %v631, %v720
        %v763 = vadd.f32 %v632, %v740
        %v764 = vadd.f32 %v633, %v760
        %s765 = scalar_lea.vmem %s1, 24
        %v766 = vld [vmem:[%s765] sm:$0xff]
        %767 = vrot.lane.b32.xlu0 %v373, 117
        %v768 = vpop.permute.xlu0 %767
        %769 = vrot.lane.b32.xlu0 %v376, 117
        %v770 = vpop.permute.xlu0 %769
        %771 = vrot.lane.b32.xlu0 %v379, 117
        %v772 = vpop.permute.xlu0 %771
        %v777 = vsel %vm382, %v766, 0
        %779 = vmatpush.msra.mxu0 0.0
        %780 = vmatpush.msra.mxu0 0.0
        %781 = vmatpush.msra.mxu0 0.0
        %782 = vmatpush.msra.mxu0 0.0
        %783 = vmatpush.msra.mxu0 0.0
        %784 = vmatpush.msra.mxu0 0.0
        %785 = vmatpush.msra.mxu0 0.0
        %786 = vmatpush.msra.mxu0 0.0
        %787 = vmatpush.msra.mxu0 0.0
        %788 = vmatpush.msra.mxu0 0.0
        %789 = vmatpush.msra.mxu0 0.0
        %790 = vmatpush.msra.mxu0 0.0
        %791 = vmatpush.msra.mxu0 %v772
        %792 = vmatpush.msra.mxu0 %v770
        %793 = vmatpush.msra.mxu0 %v768
        %794 = vmatpush.msra.mxu0 %v379
        %795 = vmatmul.f32.gmra.mxu0 %v777
        %v796 = vpop.f32.mrf.mxu0
        %v797 = vadd.f32 0.0, %v796
        %798 = vdwg.mxu0
        %s799 = scalar_lea.vmem [#allocation3], 720
        %v800 = vld [vmem:[%s799] sm:$0xff]
        %v801 = vld [vmem:[%s799 + $0x8] sm:$0xff]
        %v802 = vld [vmem:[%s799 + $0x10] sm:$0xff]
        %v803 = vld [vmem:[%s799 + $0x18] sm:$0xff]
        %v804 = vld [vmem:[%s799 + $0x20] sm:$0xff]
        %v805 = vld [vmem:[%s799 + $0x28] sm:$0xff]
        %v806 = vld [vmem:[%s799 + $0x30] sm:$0xff]
        %v807 = vld [vmem:[%s799 + $0x38] sm:$0xff]
        %v808 = vld [vmem:[%s799 + $0x40] sm:$0xff]
        %v809 = vld [vmem:[%s799 + $0x48] sm:$0xff]
        %v810 = vld [vmem:[%s799 + $0x50] sm:$0xff]
        %v811 = vld [vmem:[%s799 + $0x58] sm:$0xff]
        %v812 = vld [vmem:[%s799 + $0x60] sm:$0xff]
        %v813 = vld [vmem:[%s799 + $0x68] sm:$0xff]
        %v814 = vld [vmem:[%s799 + $0x70] sm:$0xff]
        %v815 = vld [vmem:[%s799 + $0x78] sm:$0xff]
        %v816 = vld [vmem:[%s799 + $0x80] sm:$0xff]
        %v817 = vld [vmem:[%s799 + $0x88] sm:$0xff]
        %v818 = vld [vmem:[%s799 + $0x90] sm:$0xff]
        %v819 = vld [vmem:[%s799 + $0x98] sm:$0xff]
        %v820 = vld [vmem:[%s799 + $0xa0] sm:$0xff]
        %v821 = vld [vmem:[%s799 + $0xa8] sm:$0xff]
        %v822 = vld [vmem:[%s799 + $0xb0] sm:$0xff]
        %v823 = vld [vmem:[%s799 + $0xb8] sm:$0xff]
        %v824 = vld [vmem:[%s799 + $0xc0] sm:$0xff]
        %v825 = vld [vmem:[%s799 + $0xc8] sm:$0xff]
        %v826 = vld [vmem:[%s799 + $0xd0] sm:$0xff]
        %v827 = vld [vmem:[%s799 + $0xd8] sm:$0xff]
        %v828 = vld [vmem:[%s799 + $0xe0] sm:$0xff]
        %v829 = vld [vmem:[%s799 + $0xe8] sm:$0xff]
        %v831 = vsel %vm436, %v797, 0
        %833 = vmatpush.msra.mxu0 0.0
        %834 = vmatpush.msra.mxu0 0.0
        %835 = vmatpush.msra.mxu0 0.0
        %836 = vmatpush.msra.mxu0 0.0
        %837 = vmatpush.msra.mxu0 0.0
        %838 = vmatpush.msra.mxu0 0.0
        %839 = vmatpush.msra.mxu0 %v827
        %840 = vmatpush.msra.mxu0 %v824
        %841 = vmatpush.msra.mxu0 %v821
        %842 = vmatpush.msra.mxu0 %v818
        %843 = vmatpush.msra.mxu0 %v815
        %844 = vmatpush.msra.mxu0 %v812
        %845 = vmatpush.msra.mxu0 %v809
        %846 = vmatpush.msra.mxu0 %v806
        %847 = vmatpush.msra.mxu0 %v803
        %848 = vmatpush.msra.mxu0 %v800
        %849 = vmatmul.f32.gmra.mxu0 %v831
        %v850 = vpop.f32.mrf.mxu0
        %v851 = vadd.f32 0.0, %v850
        %852 = vdwg.mxu0
        %853 = vmatpush.msra.mxu0 0.0
        %854 = vmatpush.msra.mxu0 0.0
        %855 = vmatpush.msra.mxu0 0.0
        %856 = vmatpush.msra.mxu0 0.0
        %857 = vmatpush.msra.mxu0 0.0
        %858 = vmatpush.msra.mxu0 0.0
        %859 = vmatpush.msra.mxu0 %v828
        %860 = vmatpush.msra.mxu0 %v825
        %861 = vmatpush.msra.mxu0 %v822
        %862 = vmatpush.msra.mxu0 %v819
        %863 = vmatpush.msra.mxu0 %v816
        %864 = vmatpush.msra.mxu0 %v813
        %865 = vmatpush.msra.mxu0 %v810
        %866 = vmatpush.msra.mxu0 %v807
        %867 = vmatpush.msra.mxu0 %v804
        %868 = vmatpush.msra.mxu0 %v801
        %869 = vmatmul.f32.gmra.mxu0 %v831
        %v870 = vpop.f32.mrf.mxu0
        %v871 = vadd.f32 0.0, %v870
        %872 = vdwg.mxu0
        %873 = vmatpush.msra.mxu0 0.0
        %874 = vmatpush.msra.mxu0 0.0
        %875 = vmatpush.msra.mxu0 0.0
        %876 = vmatpush.msra.mxu0 0.0
        %877 = vmatpush.msra.mxu0 0.0
        %878 = vmatpush.msra.mxu0 0.0
        %879 = vmatpush.msra.mxu0 %v829
        %880 = vmatpush.msra.mxu0 %v826
        %881 = vmatpush.msra.mxu0 %v823
        %882 = vmatpush.msra.mxu0 %v820
        %883 = vmatpush.msra.mxu0 %v817
        %884 = vmatpush.msra.mxu0 %v814
        %885 = vmatpush.msra.mxu0 %v811
        %886 = vmatpush.msra.mxu0 %v808
        %887 = vmatpush.msra.mxu0 %v805
        %888 = vmatpush.msra.mxu0 %v802
        %889 = vmatmul.f32.gmra.mxu0 %v831
        %v890 = vpop.f32.mrf.mxu0
        %v891 = vadd.f32 0.0, %v890
        %892 = vdwg.mxu0
        %v893 = vadd.f32 %v762, %v851
        %v894 = vadd.f32 %v763, %v871
        %v895 = vadd.f32 %v764, %v891
        %vm896 = vcmask 293888
        %897 = vst.msk [vmem:[#allocation2] sm:$0xff] %vm896, 0.0
        %vm898 = vcmask 851488
        %899 = vst.msk [vmem:[#allocation2 + $0x10] sm:$0xff] %vm898, 0.0
        %903 = vrot.lane.b32.xlu0 %v893, 36
        %v904 = vpop.permute.xlu0 %903
        %905 = vrot.lane.b32.xlu0 %v894, 36
        %v906 = vpop.permute.xlu0 %905
        %907 = vrot.lane.b32.xlu0 %v895, 36
        %v908 = vpop.permute.xlu0 %907
        %v909 = vsel %vm896, %v904, %v906
        %v910 = vsel %vm896, %v906, %v908
        %vm914 = vcmask 1047840
        %915 = vst.msk [vmem:[#allocation2] sm:$0xff] %vm914, %v904
        %916 = vst [vmem:[#allocation2 + $0x8] sm:$0xff] %v909
        %vm917 = vcmask 556032
        %918 = vst.msk [vmem:[#allocation2 + $0x10] sm:$0xff] %vm917, %v910
        %v919 = vld [vmem:[#allocation2] sm:$0xff]
        %v920 = vld [vmem:[#allocation2 + $0x8] sm:$0xff]
        %v921 = vld [vmem:[#allocation2 + $0x10] sm:$0xff]
        %925 = vrot.lane.b32.xlu0 %v919, 127
        %v926 = vpop.permute.xlu0 %925
        %927 = vrot.lane.b32.xlu0 %v920, 127
        %v928 = vpop.permute.xlu0 %927
        %929 = vrot.lane.b32.xlu0 %v921, 127
        %v930 = vpop.permute.xlu0 %929
        %vm931 = vcmask 1039360
        %v932 = vsel %vm931, %v926, %v928
        %v933 = vsel %vm931, %v928, %v930
        %934 = vrot.lane.b32.xlu0 %v919, 126
        %v935 = vpop.permute.xlu0 %934
        %936 = vrot.lane.b32.xlu0 %v920, 126
        %v937 = vpop.permute.xlu0 %936
        %938 = vrot.lane.b32.xlu0 %v921, 126
        %v939 = vpop.permute.xlu0 %938
        %vm940 = vcmask 1031168
        %v941 = vsel %vm940, %v935, %v937
        %v942 = vsel %vm940, %v937, %v939
        %943 = vrot.lane.b32.xlu0 %v919, 110
        %v944 = vpop.permute.xlu0 %943
        %945 = vrot.lane.b32.xlu0 %v920, 110
        %v946 = vpop.permute.xlu0 %945
        %947 = vrot.lane.b32.xlu0 %v921, 110
        %v948 = vpop.permute.xlu0 %947
        %vm949 = vcmask 900096
        %v950 = vsel %vm949, %v944, %v946
        %v951 = vsel %vm949, %v946, %v948
        %952 = vrot.lane.b32.xlu0 %v919, 109
        %v953 = vpop.permute.xlu0 %952
        %954 = vrot.lane.b32.xlu0 %v920, 109
        %v955 = vpop.permute.xlu0 %954
        %956 = vrot.lane.b32.xlu0 %v921, 109
        %v957 = vpop.permute.xlu0 %956
        %vm958 = vcmask 891904
        %v959 = vsel %vm958, %v953, %v955
        %v960 = vsel %vm958, %v955, %v957
        %961 = vrot.lane.b32.xlu0 %v919, 108
        %v962 = vpop.permute.xlu0 %961
        %963 = vrot.lane.b32.xlu0 %v920, 108
        %v964 = vpop.permute.xlu0 %963
        %965 = vrot.lane.b32.xlu0 %v921, 108
        %v966 = vpop.permute.xlu0 %965
        %vm967 = vcmask 883712
        %v968 = vsel %vm967, %v962, %v964
        %v969 = vsel %vm967, %v964, %v966
        %970 = vrot.lane.b32.xlu0 %v919, 92
        %v971 = vpop.permute.xlu0 %970
        %972 = vrot.lane.b32.xlu0 %v920, 92
        %v973 = vpop.permute.xlu0 %972
        %974 = vrot.lane.b32.xlu0 %v921, 92
        %v975 = vpop.permute.xlu0 %974
        %vm976 = vcmask 752640
        %v977 = vsel %vm976, %v971, %v973
        %v978 = vsel %vm976, %v973, %v975
        %979 = vrot.lane.b32.xlu0 %v919, 91
        %v980 = vpop.permute.xlu0 %979
        %981 = vrot.lane.b32.xlu0 %v920, 91
        %v982 = vpop.permute.xlu0 %981
        %983 = vrot.lane.b32.xlu0 %v921, 91
        %v984 = vpop.permute.xlu0 %983
        %vm985 = vcmask 744448
        %v986 = vsel %vm985, %v980, %v982
        %v987 = vsel %vm985, %v982, %v984
        %988 = vrot.lane.b32.xlu0 %v919, 90
        %v989 = vpop.permute.xlu0 %988
        %990 = vrot.lane.b32.xlu0 %v920, 90
        %v991 = vpop.permute.xlu0 %990
        %992 = vrot.lane.b32.xlu0 %v921, 90
        %v993 = vpop.permute.xlu0 %992
        %vm994 = vcmask 736256
        %v995 = vsel %vm994, %v989, %v991
        %v996 = vsel %vm994, %v991, %v993
        %v997 = vld [vmem:[#allocation8] sm:$0xff]
        %v998 = vld [vmem:[%s5] sm:$0xff]
        %1000 = vset.pattern.permute.xlu0 0
        %1001 = vperm.xlu0 %1000, %v998
        %v1002 = vpop.permute.xlu0 %1001
        %1004 = vrot.lane.b32.xlu0 %v919, 111
        %v1005 = vpop.permute.xlu0 %1004
        %1006 = vrot.lane.b32.xlu0 %v920, 111
        %v1007 = vpop.permute.xlu0 %1006
        %1008 = vrot.lane.b32.xlu0 %v921, 111
        %v1009 = vpop.permute.xlu0 %1008
        %1010 = vrot.lane.b32.xlu0 %v932, 111
        %v1011 = vpop.permute.xlu0 %1010
        %1012 = vrot.lane.b32.xlu0 %v933, 111
        %v1013 = vpop.permute.xlu0 %1012
        %1014 = vrot.lane.b32.xlu0 %v930, 111
        %v1015 = vpop.permute.xlu0 %1014
        %1016 = vrot.lane.b32.xlu0 %v941, 111
        %v1017 = vpop.permute.xlu0 %1016
        %1018 = vrot.lane.b32.xlu0 %v942, 111
        %v1019 = vpop.permute.xlu0 %1018
        %1020 = vrot.lane.b32.xlu0 %v939, 111
        %v1021 = vpop.permute.xlu0 %1020
        %1022 = vrot.lane.b32.xlu0 %v950, 111
        %v1023 = vpop.permute.xlu0 %1022
        %1024 = vrot.lane.b32.xlu0 %v951, 111
        %v1025 = vpop.permute.xlu0 %1024
        %1026 = vrot.lane.b32.xlu0 %v948, 111
        %v1027 = vpop.permute.xlu0 %1026
        %1028 = vrot.lane.b32.xlu0 %v959, 111
        %v1029 = vpop.permute.xlu0 %1028
        %1030 = vrot.lane.b32.xlu0 %v960, 111
        %v1031 = vpop.permute.xlu0 %1030
        %1032 = vrot.lane.b32.xlu0 %v957, 111
        %v1033 = vpop.permute.xlu0 %1032
        %1034 = vrot.lane.b32.xlu0 %v968, 111
        %v1035 = vpop.permute.xlu0 %1034
        %1036 = vrot.lane.b32.xlu0 %v969, 111
        %v1037 = vpop.permute.xlu0 %1036
        %1038 = vrot.lane.b32.xlu0 %v966, 111
        %v1039 = vpop.permute.xlu0 %1038
        %1040 = vrot.lane.b32.xlu0 %v977, 111
        %v1041 = vpop.permute.xlu0 %1040
        %1042 = vrot.lane.b32.xlu0 %v978, 111
        %v1043 = vpop.permute.xlu0 %1042
        %1044 = vrot.lane.b32.xlu0 %v975, 111
        %v1045 = vpop.permute.xlu0 %1044
        %1046 = vrot.lane.b32.xlu0 %v986, 111
        %v1047 = vpop.permute.xlu0 %1046
        %1048 = vrot.lane.b32.xlu0 %v987, 111
        %v1049 = vpop.permute.xlu0 %1048
        %1050 = vrot.lane.b32.xlu0 %v984, 111
        %v1051 = vpop.permute.xlu0 %1050
        %1052 = vrot.lane.b32.xlu0 %v995, 111
        %v1053 = vpop.permute.xlu0 %1052
        %1054 = vrot.lane.b32.xlu0 %v996, 111
        %v1055 = vpop.permute.xlu0 %1054
        %1056 = vrot.lane.b32.xlu0 %v993, 111
        %v1057 = vpop.permute.xlu0 %1056
        %vm1058 = vcmask 908288
        %v1059 = vsel %vm1058, %v1005, %v1007
        %v1060 = vsel %vm1058, %v1007, %v1009
        %v1061 = vsel %vm1058, %v1011, %v1013
        %v1062 = vsel %vm1058, %v1013, %v1015
        %v1063 = vsel %vm1058, %v1017, %v1019
        %v1064 = vsel %vm1058, %v1019, %v1021
        %v1065 = vsel %vm1058, %v1023, %v1025
        %v1066 = vsel %vm1058, %v1025, %v1027
        %v1067 = vsel %vm1058, %v1029, %v1031
        %v1068 = vsel %vm1058, %v1031, %v1033
        %v1069 = vsel %vm1058, %v1035, %v1037
        %v1070 = vsel %vm1058, %v1037, %v1039
        %v1071 = vsel %vm1058, %v1041, %v1043
        %v1072 = vsel %vm1058, %v1043, %v1045
        %v1073 = vsel %vm1058, %v1047, %v1049
        %v1074 = vsel %vm1058, %v1049, %v1051
        %v1075 = vsel %vm1058, %v1053, %v1055
        %v1076 = vsel %vm1058, %v1055, %v1057
        %vm1104 = vcmask 588800
        %v1106 = vsel %vm1104, %v997, 0
        %1108 = vmatpush.msra.mxu0 0.0
        %1109 = vmatpush.msra.mxu0 0.0
        %1110 = vmatpush.msra.mxu0 0.0
        %1111 = vmatpush.msra.mxu0 0.0
        %1112 = vmatpush.msra.mxu0 0.0
        %1113 = vmatpush.msra.mxu0 0.0
        %1114 = vmatpush.msra.mxu0 0.0
        %1115 = vmatpush.msra.mxu0 %v1075
        %1116 = vmatpush.msra.mxu0 %v1073
        %1117 = vmatpush.msra.mxu0 %v1071
        %1118 = vmatpush.msra.mxu0 %v1069
        %1119 = vmatpush.msra.mxu0 %v1067
        %1120 = vmatpush.msra.mxu0 %v1065
        %1121 = vmatpush.msra.mxu0 %v1063
        %1122 = vmatpush.msra.mxu0 %v1061
        %1123 = vmatpush.msra.mxu0 %v1059
        %1124 = vmatmul.f32.gmra.mxu0 %v1106
        %v1125 = vpop.f32.mrf.mxu0
        %v1126 = vadd.f32 %v1002, %v1125
        %1127 = vdwg.mxu0
        %1128 = vmatpush.msra.mxu0 0.0
        %1129 = vmatpush.msra.mxu0 0.0
        %1130 = vmatpush.msra.mxu0 0.0
        %1131 = vmatpush.msra.mxu0 0.0
        %1132 = vmatpush.msra.mxu0 0.0
        %1133 = vmatpush.msra.mxu0 0.0
        %1134 = vmatpush.msra.mxu0 0.0
        %1135 = vmatpush.msra.mxu0 %v1076
        %1136 = vmatpush.msra.mxu0 %v1074
        %1137 = vmatpush.msra.mxu0 %v1072
        %1138 = vmatpush.msra.mxu0 %v1070
        %1139 = vmatpush.msra.mxu0 %v1068
        %1140 = vmatpush.msra.mxu0 %v1066
        %1141 = vmatpush.msra.mxu0 %v1064
        %1142 = vmatpush.msra.mxu0 %v1062
        %1143 = vmatpush.msra.mxu0 %v1060
        %1144 = vmatmul.f32.gmra.mxu0 %v1106
        %v1145 = vpop.f32.mrf.mxu0
        %v1146 = vadd.f32 %v1002, %v1145
        %1147 = vdwg.mxu0
        %1148 = vmatpush.msra.mxu0 0.0
        %1149 = vmatpush.msra.mxu0 0.0
        %1150 = vmatpush.msra.mxu0 0.0
        %1151 = vmatpush.msra.mxu0 0.0
        %1152 = vmatpush.msra.mxu0 0.0
        %1153 = vmatpush.msra.mxu0 0.0
        %1154 = vmatpush.msra.mxu0 0.0
        %1155 = vmatpush.msra.mxu0 %v1057
        %1156 = vmatpush.msra.mxu0 %v1051
        %1157 = vmatpush.msra.mxu0 %v1045
        %1158 = vmatpush.msra.mxu0 %v1039
        %1159 = vmatpush.msra.mxu0 %v1033
        %1160 = vmatpush.msra.mxu0 %v1027
        %1161 = vmatpush.msra.mxu0 %v1021
        %1162 = vmatpush.msra.mxu0 %v1015
        %1163 = vmatpush.msra.mxu0 %v1009
        %1164 = vmatmul.f32.gmra.mxu0 %v1106
        %v1165 = vpop.f32.mrf.mxu0
        %v1166 = vadd.f32 %v1002, %v1165
        %1167 = vdwg.mxu0
        %v1168 = vmul.f32 %v1126, %v364
        %v1169 = vmul.f32 %v1146, %v365
        %v1170 = vmul.f32 %v1166, %v366
        %v1171 = vadd.f32 %v1168, %v1169
        %v1172 = vsel %vm382, %v1170, 0.0
        %v1173 = vadd.f32 %v1171, %v1172
        %1174 = vadd.xlane.f32.xlu0 %v1173
        %v1175 = vpop.xlane.xlu0 %1174
        %v1176 = vrot.slane %v1175, 4
        %v1177 = vadd.f32 %v1175, %v1176
        %v1178 = vrot.slane %v1177, 2
        %v1179 = vadd.f32 %v1177, %v1178
        %v1180 = vrot.slane %v1179, 1
        %v1181 = vadd.f32 %v1179, %v1180
        %s1182 = vtos %v1181
        %s1183 = smul.f32 %s1182, 0.0009765625
        %v1184 = vstv %s1183
        %v1185 = vsub.f32 %v1126, %v1184
        %v1186 = vsub.f32 %v1146, %v1184
        %v1187 = vsub.f32 %v1166, %v1184
        %v1188 = vmul.f32 %v1185, %v1185
        %v1189 = vmul.f32 %v1186, %v1186
        %v1190 = vmul.f32 %v1187, %v1187
        %v1191 = vmul.f32 %v1188, %v364
        %v1192 = vmul.f32 %v1189, %v365
        %v1193 = vmul.f32 %v1190, %v366
        %v1194 = vadd.f32 %v1191, %v1192
        %v1195 = vsel %vm382, %v1193, 0.0
        %v1196 = vadd.f32 %v1194, %v1195
        %1197 = vadd.xlane.f32.xlu0 %v1196
        %v1198 = vpop.xlane.xlu0 %1197
        %v1199 = vrot.slane %v1198, 4
        %v1200 = vadd.f32 %v1198, %v1199
        %v1201 = vrot.slane %v1200, 2
        %v1202 = vadd.f32 %v1200, %v1201
        %v1203 = vrot.slane %v1202, 1
        %v1204 = vadd.f32 %v1202, %v1203
        %s1205 = vtos %v1204
        %s1206 = smul.f32 %s1205, 0.0009765625
        %s1207 = sadd.f32 %s1206, 1e-05
        %v1208 = vstv %s1207
        %v1209 = vrsqrt.pop %v1208
        %v1210 = vmul.f32 %v1209, %v1208
        %v1211 = vmul.f32 %v1210, %v1209
        %v1212 = vmul.f32 0.5, %v1211
        %v1213 = vsub.f32 1.5, %v1212
        %v1214 = vmul.f32 %v1209, %v1213
        %vm1215 = vweird.f32 %v1208
        %vm1216 = vweird.f32 %v1209
        %vm1217 = vmor %vm1215, %vm1216
        %v1218 = vsel %vm1217, %v1209, %v1214
        %s1219 = vtos %v1218
        %v1220 = vstv %s1219
        %v1221 = vmul.f32 %v1185, %v1220
        %v1222 = vmul.f32 %v1186, %v1220
        %v1223 = vmul.f32 %v1187, %v1220
        %v1224 = vld [vmem:[%s6] sm:$0xff]
        %1226 = vset.pattern.permute.xlu0 0
        %1227 = vperm.xlu0 %1226, %v1224
        %v1228 = vpop.permute.xlu0 %1227
        %v1230 = vmul.f32 %v1221, %v1228
        %v1231 = vmul.f32 %v1222, %v1228
        %v1232 = vmul.f32 %v1223, %v1228
        %s1233 = scalar_lea.vmem %s6, 8
        %v1234 = vld [vmem:[%s1233] sm:$0xff]
        %1236 = vset.pattern.permute.xlu0 0
        %1237 = vperm.xlu0 %1236, %v1234
        %v1238 = vpop.permute.xlu0 %1237
        %v1240 = vadd.f32 %v1230, %v1238
        %v1241 = vadd.f32 %v1231, %v1238
        %v1242 = vadd.f32 %v1232, %v1238
        %v1243 = vmul.f32 %v1240, 0.70710677
        %v1244 = vmul.f32 %v1241, 0.70710677
        %v1245 = vmul.f32 %v1242, 0.70710677
        %v1246 = vand.u32 2147483647, %v1243
        %v1247 = vand.u32 2147483647, %v1244
        %v1248 = vand.u32 2147483647, %v1245
        %v1249 = vmul.f32 %v1246, 0.3275911
        %v1250 = vmul.f32 %v1247, 0.3275911
        %v1251 = vmul.f32 %v1248, 0.3275911
        %v1252 = vadd.f32 %v1249, 1.0
        %v1253 = vadd.f32 %v1250, 1.0
        %v1254 = vadd.f32 %v1251, 1.0
        %v1255 = vrcp.pop %v1252
        %v1256 = vmul.f32 %v1252, %v1255
        %v1257 = vsub.f32 1.0, %v1256
        %v1258 = vmul.f32 %v1255, %v1257
        %v1259 = vadd.f32 %v1255, %v1258
        %vm1260 = vweird.f32 %v1252
        %vm1261 = vweird.f32 %v1255
        %vm1262 = vmor %vm1260, %vm1261
        %v1263 = vsel %vm1262, %v1255, %v1259
        %v1264 = vand.u32 2147483647, %v1252
        %vm1265 = vcmp.eq.f32.partialorder %v1264, 8.507059e+37
        %v1266 = vand.u32 %v1252, 2147483648
        %v1267 = vor.u32 1.1754944e-38, %v1266
        %v1268 = vsel %vm1265, %v1267, %v1263
        %v1269 = vrcp.pop %v1253
        %v1270 = vmul.f32 %v1253, %v1269
        %v1271 = vsub.f32 1.0, %v1270
        %v1272 = vmul.f32 %v1269, %v1271
        %v1273 = vadd.f32 %v1269, %v1272
        %vm1274 = vweird.f32 %v1253
        %vm1275 = vweird.f32 %v1269
        %vm1276 = vmor %vm1274, %vm1275
        %v1277 = vsel %vm1276, %v1269, %v1273
        %v1278 = vand.u32 2147483647, %v1253
        %vm1279 = vcmp.eq.f32.partialorder %v1278, 8.507059e+37
        %v1280 = vand.u32 %v1253, 2147483648
        %v1281 = vor.u32 1.1754944e-38, %v1280
        %v1282 = vsel %vm1279, %v1281, %v1277
        %v1283 = vrcp.pop %v1254
        %v1284 = vmul.f32 %v1254, %v1283
        %v1285 = vsub.f32 1.0, %v1284
        %v1286 = vmul.f32 %v1283, %v1285
        %v1287 = vadd.f32 %v1283, %v1286
        %vm1288 = vweird.f32 %v1254
        %vm1289 = vweird.f32 %v1283
        %vm1290 = vmor %vm1288, %vm1289
        %v1291 = vsel %vm1290, %v1283, %v1287
        %v1292 = vand.u32 2147483647, %v1254
        %vm1293 = vcmp.eq.f32.partialorder %v1292, 8.507059e+37
        %v1294 = vand.u32 %v1254, 2147483648
        %v1295 = vor.u32 1.1754944e-38, %v1294
        %v1296 = vsel %vm1293, %v1295, %v1291
        %v1297 = vmul.f32 %v1268, 1.0614054
        %v1298 = vmul.f32 %v1282, 1.0614054
        %v1299 = vmul.f32 %v1296, 1.0614054
        %v1300 = vadd.f32 %v1297, -1.4531521
        %v1301 = vadd.f32 %v1298, -1.4531521
        %v1302 = vadd.f32 %v1299, -1.4531521
        %v1303 = vmul.f32 %v1268, %v1300
        %v1304 = vmul.f32 %v1282, %v1301
        %v1305 = vmul.f32 %v1296, %v1302
        %v1306 = vadd.f32 %v1303, 1.4214138
        %v1307 = vadd.f32 %v1304, 1.4214138
        %v1308 = vadd.f32 %v1305, 1.4214138
        %v1309 = vmul.f32 %v1268, %v1306
        %v1310 = vmul.f32 %v1282, %v1307
        %v1311 = vmul.f32 %v1296, %v1308
        %v1312 = vadd.f32 %v1309, -0.28449672
        %v1313 = vadd.f32 %v1310, -0.28449672
        %v1314 = vadd.f32 %v1311, -0.28449672
        %v1315 = vmul.f32 %v1268, %v1312
        %v1316 = vmul.f32 %v1282, %v1313
        %v1317 = vmul.f32 %v1296, %v1314
        %v1318 = vadd.f32 %v1315, 0.2548296
        %v1319 = vadd.f32 %v1316, 0.2548296
        %v1320 = vadd.f32 %v1317, 0.2548296
        %v1321 = vmul.f32 %v1268, %v1318
        %v1322 = vmul.f32 %v1282, %v1319
        %v1323 = vmul.f32 %v1296, %v1320
        %v1324 = vsub.f32 0.0, %v1246
        %v1325 = vsub.f32 0.0, %v1247
        %v1326 = vsub.f32 0.0, %v1248
        %v1327 = vmul.f32 %v1324, %v1246
        %v1328 = vmul.f32 %v1325, %v1247
        %v1329 = vmul.f32 %v1326, %v1248
        %v1330 = vmul.f32 %v1327, 1.442695
        %v1331 = vpow.pop %v1330
        %v1332 = vmul.f32 %v1328, 1.442695
        %v1333 = vpow.pop %v1332
        %v1334 = vmul.f32 %v1329, 1.442695
        %v1335 = vpow.pop %v1334
        %v1336 = vmul.f32 %v1321, %v1331
        %v1337 = vmul.f32 %v1322, %v1333
        %v1338 = vmul.f32 %v1323, %v1335
        %v1339 = vsub.f32 1.0, %v1336
        %v1340 = vsub.f32 1.0, %v1337
        %v1341 = vsub.f32 1.0, %v1338
        %vm1342 = vcmp.ge.f32.partialorder %v1243, 0.0
        %vm1343 = vcmp.ge.f32.partialorder %v1244, 0.0
        %vm1344 = vcmp.ge.f32.partialorder %v1245, 0.0
        %v1345 = vsub.f32 0.0, %v1339
        %v1346 = vsub.f32 0.0, %v1340
        %v1347 = vsub.f32 0.0, %v1341
        %v1348 = vsel %vm1342, %v1339, %v1345
        %v1349 = vsel %vm1343, %v1340, %v1346
        %v1350 = vsel %vm1344, %v1341, %v1347
        %v1351 = vmul.f32 %v1240, 0.5
        %v1352 = vmul.f32 %v1241, 0.5
        %v1353 = vmul.f32 %v1242, 0.5
        %v1354 = vadd.f32 %v1348, 1.0
        %v1355 = vadd.f32 %v1349, 1.0
        %v1356 = vadd.f32 %v1350, 1.0
        %v1357 = vmul.f32 %v1351, %v1354
        %v1358 = vmul.f32 %v1352, %v1355
        %v1359 = vmul.f32 %v1353, %v1356
        %v1360 = vmul.f32 %v1357, %v364
        %v1361 = vmul.f32 %v1358, %v365
        %v1362 = vmul.f32 %v1359, %v366
        %1366 = vrot.lane.b32.xlu0 %v1360, 36
        %v1367 = vpop.permute.xlu0 %1366
        %1368 = vrot.lane.b32.xlu0 %v1361, 36
        %v1369 = vpop.permute.xlu0 %1368
        %1370 = vrot.lane.b32.xlu0 %v1362, 36
        %v1371 = vpop.permute.xlu0 %1370
        %v1372 = vsel %vm896, %v1367, %v1369
        %v1373 = vsel %vm896, %v1369, %v1371
        %1377 = vst.msk [vmem:[#allocation2] sm:$0xff] %vm914, %v1367
        %1378 = vst [vmem:[#allocation2 + $0x8] sm:$0xff] %v1372
        %1379 = vst.msk [vmem:[#allocation2 + $0x10] sm:$0xff] %vm917, %v1373
        %v1380 = vld [vmem:[#allocation2] sm:$0xff]
        %v1381 = vld [vmem:[#allocation2 + $0x8] sm:$0xff]
        %v1382 = vld [vmem:[#allocation2 + $0x10] sm:$0xff]
        %1386 = vrot.lane.b32.xlu0 %v1380, 127
        %v1387 = vpop.permute.xlu0 %1386
        %1388 = vrot.lane.b32.xlu0 %v1381, 127
        %v1389 = vpop.permute.xlu0 %1388
        %1390 = vrot.lane.b32.xlu0 %v1382, 127
        %v1391 = vpop.permute.xlu0 %1390
        %v1392 = vsel %vm931, %v1387, %v1389
        %v1393 = vsel %vm931, %v1389, %v1391
        %1394 = vrot.lane.b32.xlu0 %v1380, 126
        %v1395 = vpop.permute.xlu0 %1394
        %1396 = vrot.lane.b32.xlu0 %v1381, 126
        %v1397 = vpop.permute.xlu0 %1396
        %1398 = vrot.lane.b32.xlu0 %v1382, 126
        %v1399 = vpop.permute.xlu0 %1398
        %v1400 = vsel %vm940, %v1395, %v1397
        %v1401 = vsel %vm940, %v1397, %v1399
        %1402 = vrot.lane.b32.xlu0 %v1380, 110
        %v1403 = vpop.permute.xlu0 %1402
        %1404 = vrot.lane.b32.xlu0 %v1381, 110
        %v1405 = vpop.permute.xlu0 %1404
        %1406 = vrot.lane.b32.xlu0 %v1382, 110
        %v1407 = vpop.permute.xlu0 %1406
        %v1408 = vsel %vm949, %v1403, %v1405
        %v1409 = vsel %vm949, %v1405, %v1407
        %1410 = vrot.lane.b32.xlu0 %v1380, 109
        %v1411 = vpop.permute.xlu0 %1410
        %1412 = vrot.lane.b32.xlu0 %v1381, 109
        %v1413 = vpop.permute.xlu0 %1412
        %1414 = vrot.lane.b32.xlu0 %v1382, 109
        %v1415 = vpop.permute.xlu0 %1414
        %v1416 = vsel %vm958, %v1411, %v1413
        %v1417 = vsel %vm958, %v1413, %v1415
        %1418 = vrot.lane.b32.xlu0 %v1380, 108
        %v1419 = vpop.permute.xlu0 %1418
        %1420 = vrot.lane.b32.xlu0 %v1381, 108
        %v1421 = vpop.permute.xlu0 %1420
        %1422 = vrot.lane.b32.xlu0 %v1382, 108
        %v1423 = vpop.permute.xlu0 %1422
        %v1424 = vsel %vm967, %v1419, %v1421
        %v1425 = vsel %vm967, %v1421, %v1423
        %1426 = vrot.lane.b32.xlu0 %v1380, 92
        %v1427 = vpop.permute.xlu0 %1426
        %1428 = vrot.lane.b32.xlu0 %v1381, 92
        %v1429 = vpop.permute.xlu0 %1428
        %1430 = vrot.lane.b32.xlu0 %v1382, 92
        %v1431 = vpop.permute.xlu0 %1430
        %v1432 = vsel %vm976, %v1427, %v1429
        %v1433 = vsel %vm976, %v1429, %v1431
        %1434 = vrot.lane.b32.xlu0 %v1380, 91
        %v1435 = vpop.permute.xlu0 %1434
        %1436 = vrot.lane.b32.xlu0 %v1381, 91
        %v1437 = vpop.permute.xlu0 %1436
        %1438 = vrot.lane.b32.xlu0 %v1382, 91
        %v1439 = vpop.permute.xlu0 %1438
        %v1440 = vsel %vm985, %v1435, %v1437
        %v1441 = vsel %vm985, %v1437, %v1439
        %1442 = vrot.lane.b32.xlu0 %v1380, 90
        %v1443 = vpop.permute.xlu0 %1442
        %1444 = vrot.lane.b32.xlu0 %v1381, 90
        %v1445 = vpop.permute.xlu0 %1444
        %1446 = vrot.lane.b32.xlu0 %v1382, 90
        %v1447 = vpop.permute.xlu0 %1446
        %v1448 = vsel %vm994, %v1443, %v1445
        %v1449 = vsel %vm994, %v1445, %v1447
        %s1450 = scalar_lea.vmem [#allocation8], 8
        %v1451 = vld [vmem:[%s1450] sm:$0xff]
        %s1452 = scalar_lea.vmem %s5, 8
        %v1453 = vld [vmem:[%s1452] sm:$0xff]
        %1455 = vset.pattern.permute.xlu0 0
        %1456 = vperm.xlu0 %1455, %v1453
        %v1457 = vpop.permute.xlu0 %1456
        %1459 = vrot.lane.b32.xlu0 %v1380, 111
        %v1460 = vpop.permute.xlu0 %1459
        %1461 = vrot.lane.b32.xlu0 %v1381, 111
        %v1462 = vpop.permute.xlu0 %1461
        %1463 = vrot.lane.b32.xlu0 %v1382, 111
        %v1464 = vpop.permute.xlu0 %1463
        %1465 = vrot.lane.b32.xlu0 %v1392, 111
        %v1466 = vpop.permute.xlu0 %1465
        %1467 = vrot.lane.b32.xlu0 %v1393, 111
        %v1468 = vpop.permute.xlu0 %1467
        %1469 = vrot.lane.b32.xlu0 %v1391, 111
        %v1470 = vpop.permute.xlu0 %1469
        %1471 = vrot.lane.b32.xlu0 %v1400, 111
        %v1472 = vpop.permute.xlu0 %1471
        %1473 = vrot.lane.b32.xlu0 %v1401, 111
        %v1474 = vpop.permute.xlu0 %1473
        %1475 = vrot.lane.b32.xlu0 %v1399, 111
        %v1476 = vpop.permute.xlu0 %1475
        %1477 = vrot.lane.b32.xlu0 %v1408, 111
        %v1478 = vpop.permute.xlu0 %1477
        %1479 = vrot.lane.b32.xlu0 %v1409, 111
        %v1480 = vpop.permute.xlu0 %1479
        %1481 = vrot.lane.b32.xlu0 %v1407, 111
        %v1482 = vpop.permute.xlu0 %1481
        %1483 = vrot.lane.b32.xlu0 %v1416, 111
        %v1484 = vpop.permute.xlu0 %1483
        %1485 = vrot.lane.b32.xlu0 %v1417, 111
        %v1486 = vpop.permute.xlu0 %1485
        %1487 = vrot.lane.b32.xlu0 %v1415, 111
        %v1488 = vpop.permute.xlu0 %1487
        %1489 = vrot.lane.b32.xlu0 %v1424, 111
        %v1490 = vpop.permute.xlu0 %1489
        %1491 = vrot.lane.b32.xlu0 %v1425, 111
        %v1492 = vpop.permute.xlu0 %1491
        %1493 = vrot.lane.b32.xlu0 %v1423, 111
        %v1494 = vpop.permute.xlu0 %1493
        %1495 = vrot.lane.b32.xlu0 %v1432, 111
        %v1496 = vpop.permute.xlu0 %1495
        %1497 = vrot.lane.b32.xlu0 %v1433, 111
        %v1498 = vpop.permute.xlu0 %1497
        %1499 = vrot.lane.b32.xlu0 %v1431, 111
        %v1500 = vpop.permute.xlu0 %1499
        %1501 = vrot.lane.b32.xlu0 %v1440, 111
        %v1502 = vpop.permute.xlu0 %1501
        %1503 = vrot.lane.b32.xlu0 %v1441, 111
        %v1504 = vpop.permute.xlu0 %1503
        %1505 = vrot.lane.b32.xlu0 %v1439, 111
        %v1506 = vpop.permute.xlu0 %1505
        %1507 = vrot.lane.b32.xlu0 %v1448, 111
        %v1508 = vpop.permute.xlu0 %1507
        %1509 = vrot.lane.b32.xlu0 %v1449, 111
        %v1510 = vpop.permute.xlu0 %1509
        %1511 = vrot.lane.b32.xlu0 %v1447, 111
        %v1512 = vpop.permute.xlu0 %1511
        %v1513 = vsel %vm1058, %v1460, %v1462
        %v1514 = vsel %vm1058, %v1462, %v1464
        %v1515 = vsel %vm1058, %v1466, %v1468
        %v1516 = vsel %vm1058, %v1468, %v1470
        %v1517 = vsel %vm1058, %v1472, %v1474
        %v1518 = vsel %vm1058, %v1474, %v1476
        %v1519 = vsel %vm1058, %v1478, %v1480
        %v1520 = vsel %vm1058, %v1480, %v1482
        %v1521 = vsel %vm1058, %v1484, %v1486
        %v1522 = vsel %vm1058, %v1486, %v1488
        %v1523 = vsel %vm1058, %v1490, %v1492
        %v1524 = vsel %vm1058, %v1492, %v1494
        %v1525 = vsel %vm1058, %v1496, %v1498
        %v1526 = vsel %vm1058, %v1498, %v1500
        %v1527 = vsel %vm1058, %v1502, %v1504
        %v1528 = vsel %vm1058, %v1504, %v1506
        %v1529 = vsel %vm1058, %v1508, %v1510
        %v1530 = vsel %vm1058, %v1510, %v1512
        %v1559 = vsel %vm1104, %v1451, 0
        %1561 = vmatpush.msra.mxu0 0.0
        %1562 = vmatpush.msra.mxu0 0.0
        %1563 = vmatpush.msra.mxu0 0.0
        %1564 = vmatpush.msra.mxu0 0.0
        %1565 = vmatpush.msra.mxu0 0.0
        %1566 = vmatpush.msra.mxu0 0.0
        %1567 = vmatpush.msra.mxu0 0.0
        %1568 = vmatpush.msra.mxu0 %v1529
        %1569 = vmatpush.msra.mxu0 %v1527
        %1570 = vmatpush.msra.mxu0 %v1525
        %1571 = vmatpush.msra.mxu0 %v1523
        %1572 = vmatpush.msra.mxu0 %v1521
        %1573 = vmatpush.msra.mxu0 %v1519
        %1574 = vmatpush.msra.mxu0 %v1517
        %1575 = vmatpush.msra.mxu0 %v1515
        %1576 = vmatpush.msra.mxu0 %v1513
        %1577 = vmatmul.f32.gmra.mxu0 %v1559
        %v1578 = vpop.f32.mrf.mxu0
        %v1579 = vadd.f32 %v1457, %v1578
        %1580 = vdwg.mxu0
        %1581 = vmatpush.msra.mxu0 0.0
        %1582 = vmatpush.msra.mxu0 0.0
        %1583 = vmatpush.msra.mxu0 0.0
        %1584 = vmatpush.msra.mxu0 0.0
        %1585 = vmatpush.msra.mxu0 0.0
        %1586 = vmatpush.msra.mxu0 0.0
        %1587 = vmatpush.msra.mxu0 0.0
        %1588 = vmatpush.msra.mxu0 %v1530
        %1589 = vmatpush.msra.mxu0 %v1528
        %1590 = vmatpush.msra.mxu0 %v1526
        %1591 = vmatpush.msra.mxu0 %v1524
        %1592 = vmatpush.msra.mxu0 %v1522
        %1593 = vmatpush.msra.mxu0 %v1520
        %1594 = vmatpush.msra.mxu0 %v1518
        %1595 = vmatpush.msra.mxu0 %v1516
        %1596 = vmatpush.msra.mxu0 %v1514
        %1597 = vmatmul.f32.gmra.mxu0 %v1559
        %v1598 = vpop.f32.mrf.mxu0
        %v1599 = vadd.f32 %v1457, %v1598
        %1600 = vdwg.mxu0
        %1601 = vmatpush.msra.mxu0 0.0
        %1602 = vmatpush.msra.mxu0 0.0
        %1603 = vmatpush.msra.mxu0 0.0
        %1604 = vmatpush.msra.mxu0 0.0
        %1605 = vmatpush.msra.mxu0 0.0
        %1606 = vmatpush.msra.mxu0 0.0
        %1607 = vmatpush.msra.mxu0 0.0
        %1608 = vmatpush.msra.mxu0 %v1512
        %1609 = vmatpush.msra.mxu0 %v1506
        %1610 = vmatpush.msra.mxu0 %v1500
        %1611 = vmatpush.msra.mxu0 %v1494
        %1612 = vmatpush.msra.mxu0 %v1488
        %1613 = vmatpush.msra.mxu0 %v1482
        %1614 = vmatpush.msra.mxu0 %v1476
        %1615 = vmatpush.msra.mxu0 %v1470
        %1616 = vmatpush.msra.mxu0 %v1464
        %1617 = vmatmul.f32.gmra.mxu0 %v1559
        %v1618 = vpop.f32.mrf.mxu0
        %v1619 = vadd.f32 %v1457, %v1618
        %1620 = vdwg.mxu0
        %v1621 = vmul.f32 %v1579, %v364
        %v1622 = vmul.f32 %v1599, %v365
        %v1623 = vmul.f32 %v1619, %v366
        %v1624 = vadd.f32 %v1621, %v1622
        %v1625 = vsel %vm382, %v1623, 0.0
        %v1626 = vadd.f32 %v1624, %v1625
        %1627 = vadd.xlane.f32.xlu0 %v1626
        %v1628 = vpop.xlane.xlu0 %1627
        %v1629 = vrot.slane %v1628, 4
        %v1630 = vadd.f32 %v1628, %v1629
        %v1631 = vrot.slane %v1630, 2
        %v1632 = vadd.f32 %v1630, %v1631
        %v1633 = vrot.slane %v1632, 1
        %v1634 = vadd.f32 %v1632, %v1633
        %s1635 = vtos %v1634
        %s1636 = smul.f32 %s1635, 0.0009765625
        %v1637 = vstv %s1636
        %v1638 = vsub.f32 %v1579, %v1637
        %v1639 = vsub.f32 %v1599, %v1637
        %v1640 = vsub.f32 %v1619, %v1637
        %v1641 = vmul.f32 %v1638, %v1638
        %v1642 = vmul.f32 %v1639, %v1639
        %v1643 = vmul.f32 %v1640, %v1640
        %v1644 = vmul.f32 %v1641, %v364
        %v1645 = vmul.f32 %v1642, %v365
        %v1646 = vmul.f32 %v1643, %v366
        %v1647 = vadd.f32 %v1644, %v1645
        %v1648 = vsel %vm382, %v1646, 0.0
        %v1649 = vadd.f32 %v1647, %v1648
        %1650 = vadd.xlane.f32.xlu0 %v1649
        %v1651 = vpop.xlane.xlu0 %1650
        %v1652 = vrot.slane %v1651, 4
        %v1653 = vadd.f32 %v1651, %v1652
        %v1654 = vrot.slane %v1653, 2
        %v1655 = vadd.f32 %v1653, %v1654
        %v1656 = vrot.slane %v1655, 1
        %v1657 = vadd.f32 %v1655, %v1656
        %s1658 = vtos %v1657
        %s1659 = smul.f32 %s1658, 0.0009765625
        %s1660 = sadd.f32 %s1659, 1e-05
        %v1661 = vstv %s1660
        %v1662 = vrsqrt.pop %v1661
        %v1663 = vmul.f32 %v1662, %v1661
        %v1664 = vmul.f32 %v1663, %v1662
        %v1665 = vmul.f32 0.5, %v1664
        %v1666 = vsub.f32 1.5, %v1665
        %v1667 = vmul.f32 %v1662, %v1666
        %vm1668 = vweird.f32 %v1661
        %vm1669 = vweird.f32 %v1662
        %vm1670 = vmor %vm1668, %vm1669
        %v1671 = vsel %vm1670, %v1662, %v1667
        %s1672 = vtos %v1671
        %v1673 = vstv %s1672
        %v1674 = vmul.f32 %v1638, %v1673
        %v1675 = vmul.f32 %v1639, %v1673
        %v1676 = vmul.f32 %v1640, %v1673
        %s1677 = scalar_lea.vmem %s6, 16
        %v1678 = vld [vmem:[%s1677] sm:$0xff]
        %1680 = vset.pattern.permute.xlu0 0
        %1681 = vperm.xlu0 %1680, %v1678
        %v1682 = vpop.permute.xlu0 %1681
        %v1684 = vmul.f32 %v1674, %v1682
        %v1685 = vmul.f32 %v1675, %v1682
        %v1686 = vmul.f32 %v1676, %v1682
        %s1687 = scalar_lea.vmem %s6, 24
        %v1688 = vld [vmem:[%s1687] sm:$0xff]
        %1690 = vset.pattern.permute.xlu0 0
        %1691 = vperm.xlu0 %1690, %v1688
        %v1692 = vpop.permute.xlu0 %1691
        %v1694 = vadd.f32 %v1684, %v1692
        %v1695 = vadd.f32 %v1685, %v1692
        %v1696 = vadd.f32 %v1686, %v1692
        %v1697 = vmul.f32 %v1694, 0.70710677
        %v1698 = vmul.f32 %v1695, 0.70710677
        %v1699 = vmul.f32 %v1696, 0.70710677
        %v1700 = vand.u32 2147483647, %v1697
        %v1701 = vand.u32 2147483647, %v1698
        %v1702 = vand.u32 2147483647, %v1699
        %v1703 = vmul.f32 %v1700, 0.3275911
        %v1704 = vmul.f32 %v1701, 0.3275911
        %v1705 = vmul.f32 %v1702, 0.3275911
        %v1706 = vadd.f32 %v1703, 1.0
        %v1707 = vadd.f32 %v1704, 1.0
        %v1708 = vadd.f32 %v1705, 1.0
        %v1709 = vrcp.pop %v1706
        %v1710 = vmul.f32 %v1706, %v1709
        %v1711 = vsub.f32 1.0, %v1710
        %v1712 = vmul.f32 %v1709, %v1711
        %v1713 = vadd.f32 %v1709, %v1712
        %vm1714 = vweird.f32 %v1706
        %vm1715 = vweird.f32 %v1709
        %vm1716 = vmor %vm1714, %vm1715
        %v1717 = vsel %vm1716, %v1709, %v1713
        %v1718 = vand.u32 2147483647, %v1706
        %vm1719 = vcmp.eq.f32.partialorder %v1718, 8.507059e+37
        %v1720 = vand.u32 %v1706, 2147483648
        %v1721 = vor.u32 1.1754944e-38, %v1720
        %v1722 = vsel %vm1719, %v1721, %v1717
        %v1723 = vrcp.pop %v1707
        %v1724 = vmul.f32 %v1707, %v1723
        %v1725 = vsub.f32 1.0, %v1724
        %v1726 = vmul.f32 %v1723, %v1725
        %v1727 = vadd.f32 %v1723, %v1726
        %vm1728 = vweird.f32 %v1707
        %vm1729 = vweird.f32 %v1723
        %vm1730 = vmor %vm1728, %vm1729
        %v1731 = vsel %vm1730, %v1723, %v1727
        %v1732 = vand.u32 2147483647, %v1707
        %vm1733 = vcmp.eq.f32.partialorder %v1732, 8.507059e+37
        %v1734 = vand.u32 %v1707, 2147483648
        %v1735 = vor.u32 1.1754944e-38, %v1734
        %v1736 = vsel %vm1733, %v1735, %v1731
        %v1737 = vrcp.pop %v1708
        %v1738 = vmul.f32 %v1708, %v1737
        %v1739 = vsub.f32 1.0, %v1738
        %v1740 = vmul.f32 %v1737, %v1739
        %v1741 = vadd.f32 %v1737, %v1740
        %vm1742 = vweird.f32 %v1708
        %vm1743 = vweird.f32 %v1737
        %vm1744 = vmor %vm1742, %vm1743
        %v1745 = vsel %vm1744, %v1737, %v1741
        %v1746 = vand.u32 2147483647, %v1708
        %vm1747 = vcmp.eq.f32.partialorder %v1746, 8.507059e+37
        %v1748 = vand.u32 %v1708, 2147483648
        %v1749 = vor.u32 1.1754944e-38, %v1748
        %v1750 = vsel %vm1747, %v1749, %v1745
        %v1751 = vmul.f32 %v1722, 1.0614054
        %v1752 = vmul.f32 %v1736, 1.0614054
        %v1753 = vmul.f32 %v1750, 1.0614054
        %v1754 = vadd.f32 %v1751, -1.4531521
        %v1755 = vadd.f32 %v1752, -1.4531521
        %v1756 = vadd.f32 %v1753, -1.4531521
        %v1757 = vmul.f32 %v1722, %v1754
        %v1758 = vmul.f32 %v1736, %v1755
        %v1759 = vmul.f32 %v1750, %v1756
        %v1760 = vadd.f32 %v1757, 1.4214138
        %v1761 = vadd.f32 %v1758, 1.4214138
        %v1762 = vadd.f32 %v1759, 1.4214138
        %v1763 = vmul.f32 %v1722, %v1760
        %v1764 = vmul.f32 %v1736, %v1761
        %v1765 = vmul.f32 %v1750, %v1762
        %v1766 = vadd.f32 %v1763, -0.28449672
        %v1767 = vadd.f32 %v1764, -0.28449672
        %v1768 = vadd.f32 %v1765, -0.28449672
        %v1769 = vmul.f32 %v1722, %v1766
        %v1770 = vmul.f32 %v1736, %v1767
        %v1771 = vmul.f32 %v1750, %v1768
        %v1772 = vadd.f32 %v1769, 0.2548296
        %v1773 = vadd.f32 %v1770, 0.2548296
        %v1774 = vadd.f32 %v1771, 0.2548296
        %v1775 = vmul.f32 %v1722, %v1772
        %v1776 = vmul.f32 %v1736, %v1773
        %v1777 = vmul.f32 %v1750, %v1774
        %v1778 = vsub.f32 0.0, %v1700
        %v1779 = vsub.f32 0.0, %v1701
        %v1780 = vsub.f32 0.0, %v1702
        %v1781 = vmul.f32 %v1778, %v1700
        %v1782 = vmul.f32 %v1779, %v1701
        %v1783 = vmul.f32 %v1780, %v1702
        %v1784 = vmul.f32 %v1781, 1.442695
        %v1785 = vpow.pop %v1784
        %v1786 = vmul.f32 %v1782, 1.442695
        %v1787 = vpow.pop %v1786
        %v1788 = vmul.f32 %v1783, 1.442695
        %v1789 = vpow.pop %v1788
        %v1790 = vmul.f32 %v1775, %v1785
        %v1791 = vmul.f32 %v1776, %v1787
        %v1792 = vmul.f32 %v1777, %v1789
        %v1793 = vsub.f32 1.0, %v1790
        %v1794 = vsub.f32 1.0, %v1791
        %v1795 = vsub.f32 1.0, %v1792
        %vm1796 = vcmp.ge.f32.partialorder %v1697, 0.0
        %vm1797 = vcmp.ge.f32.partialorder %v1698, 0.0
        %vm1798 = vcmp.ge.f32.partialorder %v1699, 0.0
        %v1799 = vsub.f32 0.0, %v1793
        %v1800 = vsub.f32 0.0, %v1794
        %v1801 = vsub.f32 0.0, %v1795
        %v1802 = vsel %vm1796, %v1793, %v1799
        %v1803 = vsel %vm1797, %v1794, %v1800
        %v1804 = vsel %vm1798, %v1795, %v1801
        %v1805 = vmul.f32 %v1694, 0.5
        %v1806 = vmul.f32 %v1695, 0.5
        %v1807 = vmul.f32 %v1696, 0.5
        %v1808 = vadd.f32 %v1802, 1.0
        %v1809 = vadd.f32 %v1803, 1.0
        %v1810 = vadd.f32 %v1804, 1.0
        %v1811 = vmul.f32 %v1805, %v1808
        %v1812 = vmul.f32 %v1806, %v1809
        %v1813 = vmul.f32 %v1807, %v1810
        %v1814 = vmul.f32 %v1811, %v364
        %v1815 = vmul.f32 %v1812, %v365
        %v1816 = vmul.f32 %v1813, %v366
        %v1819 = vrot.slane %v1815, 4
        %vm1820 = vcmask 1043456
        %v1821 = vsel %vm1820, %v1814, %v1819
        %1823 = vst [vmem:[%s359] sm:$0xff] %v1821
        %vm1824 = vcmask 257024
        %1825 = vst.msk [vmem:[%s359 + $0x8] sm:$0xf] %vm1824, %v1816
        %s1826 = sand.u32 %s206, 1
        %s1827 = scalar_lea.sflag [#allocation5], %s1826
        %s1828 = sand.u32 %s206, 1
        %s1829 = smul.addr %s1828, 12
        %s1830 = scalar_lea.vmem [#allocation11], %s1829
        // Predicated region
        $region69: #{tpu_custom_call.1} parent=51 // pred_check
          %p1831 = pneg %p216
        $region70: #{tpu_custom_call.1} parent=51 // pred_check_branch
          %1833 = sbr.rel (%p1831) target = $region72
        $region71: #{tpu_custom_call.1} parent=51 // pred_region
          %1835 = vsyncadd %s1827, 0
          %s1836 = smul.addr %s25, 3
          %s1837 = smul.addr %s1836, 4
          %s1838 = scalar_lea.hbm %s8, %s1837
          %s1840 = sshll.u32 %s1830, 4
          %s1841 = int_to_ptr.vmem [resolvable:$true] %s1840
          %s1842 = sshll.u32 %s1838, 4
          %s1843 = int_to_ptr.hbm [resolvable:$true] %s1842
          %1845 = dma.vmem_to_hbm [thread:$0]  %s1841, 192, %s1843, %s1827
        $region72: #{tpu_custom_call.1} parent=51 // pred_fallthru
          _
      $region52: #{tpu_custom_call.1} parent=5 // pred_fallthru
        _
      %p1846 = scmp.le.s32.totalorder 2, %s20
      // Predicated region
      $region73: #{tpu_custom_call.1} parent=5 // pred_check
        %p1847 = pneg %p1846
      $region74: #{tpu_custom_call.1} parent=5 // pred_check_branch
        %1849 = sbr.rel (%p1847) target = $region76
      $region75: #{tpu_custom_call.1} parent=5 // pred_region
        %s1850 = ssub.s32 %s20, 2
        // Predicated region
        $region77: #{tpu_custom_call.1} parent=75 // pred_check
          %p1851 = pneg %p222
        $region78: #{tpu_custom_call.1} parent=75 // pred_check_branch
          %1853 = sbr.rel (%p1851) target = $region80
        $region79: #{tpu_custom_call.1} parent=75 // pred_region
          %s1854 = sand.u32 %s207, 1
          %s1855 = scalar_lea.sflag [#allocation5], %s1854
          %s1856 = sand.u32 %s207, 1
          %s1857 = smul.addr %s1856, 12
          %s1858 = scalar_lea.vmem [#allocation11], %s1857
          %1860 = dma.done %s1855, 192
        $region80: #{tpu_custom_call.1} parent=75 // pred_fallthru
          _
      $region76: #{tpu_custom_call.1} parent=5 // pred_fallthru
        _
    $region6: #{tpu_custom_call.1} parent=1 // loop_footer
      %s24 = sadd.s32 1, %s20
    $region7: #{tpu_custom_call.1} parent=1 // loop_footer_branch
      %19 = sbr.rel target = $region3
    $region8: #{tpu_custom_call.1} parent=1 // loop_exit
      _
    %1861 = vsyncpa [#allocation4], 1
    %s1862 = scalar_lea.sflag [#allocation4], 1
    %1863 = vsyncpa %s1862, 1
    %1864 = vsyncpa [#allocation7], 1
    %1865 = vsyncpa [#allocation10], 1
    %1866 = vsyncpa [#allocation5], 1
    %s1867 = scalar_lea.sflag [#allocation5], 1
    %1868 = vsyncpa %s1867, 1

</llo_original>
